<compile_context>
chip_gen: v7x
topology: tpu7x:2x2x1
jax: 0.10.0
libtpu: 0.0.40
codegen_flags: <defaults>
</compile_context>

<pallas_src>
import functools

import jax
import jax.numpy as jnp
from jax.experimental import pallas as pl
from jax.experimental.pallas import tpu as pltpu


def _round_up(x, m):
    return (x + m - 1) // m * m


# ----------------------------------------------------------------------------
# Packing helpers: each gate gets its own lane-aligned (Hp-wide) column slab.
# ----------------------------------------------------------------------------
def _pack_gate_cols(w, H, Hp):
    """w: (rows, 3H) -> (rows, 3Hp), gates [r|z|n] each padded to Hp columns."""
    r, z, n = w[:, :H], w[:, H:2 * H], w[:, 2 * H:]
    pad = lambda a: jnp.pad(a, ((0, 0), (0, Hp - H)))
    return jnp.concatenate([pad(r), pad(z), pad(n)], axis=1)


def _pack_gate_vec(v, H, Hp):
    r, z, n = v[:H], v[H:2 * H], v[2 * H:]
    pad = lambda a: jnp.pad(a, (0, Hp - H))
    return pad(r), pad(z), pad(n)


def _vmem_estimate_bytes(tb, tc, isz, hp, in_item, out_item):
    """Rough VMEM footprint of one grid step (blocks + invariants + scratch)."""
    g = 3 * hp
    blocks = (2 * tb * tc * isz * in_item                 # x slice, double-buffered
              + 2 * tb * max(tc // 8, 1) * 8 * 128 * 4    # (TB,TC,1) weight, lane-padded
              + 2 * tb * tc * hp * out_item)              # output block, double-buffered
    consts = (isz * g + hp * g + g + hp + tb * hp) * 4    # single-buffered invariants
    scratch = (tc * tb * g + tc * tb * hp + tb * hp) * 4  # gi / out / h-carry scratch
    return blocks + consts + scratch


# ----------------------------------------------------------------------------
# Recurrent Pallas kernel: one grid step == (batch tile, time chunk of TC steps)
# ----------------------------------------------------------------------------
def _aigru_kernel(x_ref, w_ref, h0_ref, wih_ref, whh_ref, bias_ref, bhhn_ref,
                  o_ref, gi_ref, out_tm_ref, h_ref, *, hp, steps, tb, unroll):
    # Grid = (batch tiles [parallel], time chunks [arbitrary, innermost]).
    # NOTE: the VMEM hidden-state carry below is only correct because the time
    # axis is the LAST grid axis and marked "arbitrary": row-major grid
    # iteration keeps all time chunks of one batch tile consecutive on one core.
    t_chunk = pl.program_id(1)

    @pl.when(t_chunk == 0)
    def _():                                    # new batch tile -> reset carry
        h_ref[...] = h0_ref[...]

    # ---- fused, h-independent input projection for the whole chunk ---------
    # (TB, TC, I) * (TB, TC, 1)  -> time-major (TC*TB, I) -> one fat MXU matmul
    xw = x_ref[...].astype(jnp.float32) * w_ref[...].astype(jnp.float32)
    xw_t = jnp.transpose(xw, (1, 0, 2)).reshape(steps * tb, x_ref.shape[2])
    gi = jnp.dot(xw_t, wih_ref[...], preferred_element_type=jnp.float32)
    gi_ref[...] = (gi + bias_ref[...]).reshape(steps, tb, 3 * hp)

    whh = whh_ref[...]                                    # (Hp, 3Hp) f32
    bhh_n = jnp.broadcast_to(bhhn_ref[...], (tb, hp))     # hoisted out of the loop

    # TODO(synk): for small Hp, keep W_hh resident in MXU staging registers
    # across the unrolled chunk (pltpu.matmul_push_rhs / matmul_acc_lhs /
    # matmul_pop) instead of a fresh jnp.dot each step.
    def step(t, h):
        g = gi_ref[t]                                     # (TB, 3Hp) f32
        gh = jnp.dot(h, whh, preferred_element_type=jnp.float32)
        r = jax.nn.sigmoid(g[:, :hp] + gh[:, :hp])
        z = jax.nn.sigmoid(g[:, hp:2 * hp] + gh[:, hp:2 * hp])
        n = jnp.tanh(g[:, 2 * hp:] + r * (gh[:, 2 * hp:] + bhh_n))
        h_new = n + z * (h - n)                           # == (1 - z) * n + z * h
        out_tm_ref[t] = h_new
        return h_new

    # hidden state lives in vregs within the chunk, in VMEM across chunks
    h_ref[...] = jax.lax.fori_loop(0, steps, step, h_ref[...], unroll=unroll)

    # one VMEM layout swap per chunk -> batch-major, lane-dense output block
    o_ref[...] = jnp.transpose(out_tm_ref[...], (1, 0, 2)).astype(o_ref.dtype)


# ----------------------------------------------------------------------------
# Wrapper
# ----------------------------------------------------------------------------
def aigru_forward(x, weight, params, h_0=None, *, time_block=None,
                  batch_block=None, unroll=8):
    """x: (B, T, I) batch-first, weight: (B, T).  Returns gru_out: (B, T, H)."""
    B, T, I = x.shape
    assert weight.shape == (B, T), (x.shape, weight.shape)
    w_ih, w_hh, b_ih, b_hh = params            # (3H, I), (3H, H), (3H,), (3H,)
    H = w_hh.shape[1]
    Hp = _round_up(H, 128)
    G = 3 * Hp
    out_dtype = x.dtype
    in_item = jnp.dtype(x.dtype).itemsize
    out_item = jnp.dtype(out_dtype).itemsize

    # ---- time chunking: pad T up instead of shrinking TC toward 1 ----------
    TC = _round_up(min(64 if time_block is None else int(time_block),
                       _round_up(T, 8)), 8)

    # ---- batch tiling: >=2 tiles when possible so v7x's 2nd core has work --
    if batch_block is None:
        TB = B
        if B % 16 == 0:
            TB = B // 2
        while TB > 128 and TB % 16 == 0:       # bound MXU-M / vreg pressure
            TB //= 2
    else:
        TB = int(batch_block)
    assert B % TB == 0 and (TB == B or TB % 8 == 0), (B, TB)

    # ---- shrink tiles until the VMEM estimate fits a v7x-safe budget -------
    budget = 28 << 20
    while _vmem_estimate_bytes(TB, TC, I, Hp, in_item, out_item) > budget and TC > 8:
        TC = max(8, (TC // 2) // 8 * 8)
    while (_vmem_estimate_bytes(TB, TC, I, Hp, in_item, out_item) > budget
           and TB % 16 == 0 and TB > 8):
        TB //= 2
    Tp = _round_up(T, TC)
    nb, nt = B // TB, Tp // TC
    est = _vmem_estimate_bytes(TB, TC, I, Hp, in_item, out_item)
    vmem_limit = int(min(48 << 20, max(16 << 20, 2 * est)))

    # ---- pad along T (padded steps see zero input; outputs are sliced off) -
    if Tp != T:
        x = jnp.pad(x, ((0, 0), (0, Tp - T), (0, 0)))
        weight = jnp.pad(weight, ((0, 0), (0, Tp - T)))
    w3 = weight.astype(jnp.float32).reshape(B, Tp, 1)

    # ---- pack weights/biases into lane-aligned per-gate slabs (width Hp) ---
    wih_p = _pack_gate_cols(jnp.transpose(w_ih).astype(jnp.float32), H, Hp)   # (I, 3Hp)
    whh_p = _pack_gate_cols(jnp.transpose(w_hh).astype(jnp.float32), H, Hp)   # (H, 3Hp)
    whh_p = jnp.pad(whh_p, ((0, Hp - H), (0, 0)))                             # (Hp, 3Hp)
    bih_r, bih_z, bih_n = _pack_gate_vec(b_ih.astype(jnp.float32), H, Hp)
    bhh_r, bhh_z, bhh_n = _pack_gate_vec(b_hh.astype(jnp.float32), H, Hp)
    bias_gi = jnp.concatenate([bih_r + bhh_r, bih_z + bhh_z, bih_n]).reshape(1, G)
    bhh_n = bhh_n.reshape(1, Hp)

    # ---- initial hidden state (padded columns stay exactly zero) -----------
    if h_0 is None:
        h0 = jnp.zeros((B, Hp), jnp.float32)
    else:
        h0 = jnp.pad(h_0.reshape(B, H).astype(jnp.float32),
                     ((0, 0), (0, Hp - H)))

    kernel = functools.partial(_aigru_kernel, hp=Hp, steps=TC, tb=TB,
                               unroll=min(int(unroll), TC))
    inv = dict(pipeline_mode=pl.Buffered(1))   # grid-invariant -> single buffer

    cost = pl.CostEstimate(
        flops=2 * Tp * B * (I * G + Hp * G),
        transcendentals=3 * Tp * B * Hp,
        bytes_accessed=(x.size * in_item + w3.size * 4 + h0.size * 4
                        + (I * G + Hp * G + G + Hp) * 4
                        + B * Tp * Hp * out_item))

    out = pl.pallas_call(
        kernel,
        out_shape=jax.ShapeDtypeStruct((B, Tp, Hp), out_dtype),
        grid_spec=pltpu.PrefetchScalarGridSpec(
            num_scalar_prefetch=0,
            grid=(nb, nt),                     # (batch tiles, time chunks)
            in_specs=[
                pl.BlockSpec((TB, TC, I), lambda b, t: (b, t, 0)),    # x slice
                pl.BlockSpec((TB, TC, 1), lambda b, t: (b, t, 0)),    # attn weight
                pl.BlockSpec((TB, Hp), lambda b, t: (b, 0), **inv),   # h_0 tile
                pl.BlockSpec((I, G), lambda b, t: (0, 0), **inv),     # W_ih^T (packed)
                pl.BlockSpec((Hp, G), lambda b, t: (0, 0), **inv),    # W_hh^T (packed)
                pl.BlockSpec((1, G), lambda b, t: (0, 0), **inv),     # folded input bias
                pl.BlockSpec((1, Hp), lambda b, t: (0, 0), **inv),    # b_hh[n]
            ],
            out_specs=pl.BlockSpec((TB, TC, Hp), lambda b, t: (b, t, 0)),
            scratch_shapes=[
                pltpu.VMEM((TC, TB, G), jnp.float32),    # gi chunk (time-major)
                pltpu.VMEM((TC, TB, Hp), jnp.float32),   # out chunk (time-major)
                pltpu.VMEM((TB, Hp), jnp.float32),       # hidden-state carry
            ],
        ),
        compiler_params=pltpu.CompilerParams(
            # batch tiles independent (megacore on v7x); time chunks sequential
            dimension_semantics=("parallel", "arbitrary"),
            vmem_limit_bytes=vmem_limit,
        ),
        cost_estimate=cost,
    )(x, w3, h0, wih_p, whh_p, bias_gi, bhh_n)

    # drop T padding and lane padding (cheap slice, fuses into the consumer)
    return out[:, :T, :H]


# ----------------------------------------------------------------------------
# Pure-JAX reference of AIGRU.forward (PyTorch nn.GRU semantics, 1 layer)
# ----------------------------------------------------------------------------
def aigru_reference(x, weight, params, h_0=None):
    w_ih, w_hh, b_ih, b_hh = params
    H = w_hh.shape[1]
    B, T, _ = x.shape
    xw = x.astype(jnp.float32) * weight.astype(jnp.float32)[..., None]
    h = (jnp.zeros((B, H), jnp.float32) if h_0 is None
         else h_0.reshape(B, H).astype(jnp.float32))

    def step(h, x_t):
        gi = x_t @ w_ih.T + b_ih
        gh = h @ w_hh.T + b_hh
        i_r, i_z, i_n = jnp.split(gi, 3, axis=-1)
        h_r, h_z, h_n = jnp.split(gh, 3, axis=-1)
        r = jax.nn.sigmoid(i_r + h_r)
        z = jax.nn.sigmoid(i_z + h_z)
        n = jnp.tanh(i_n + r * h_n)
        h_new = (1.0 - z) * n + z * h
        return h_new, h_new

    _, out = jax.lax.scan(step, h, jnp.transpose(xw, (1, 0, 2)))
    return jnp.transpose(out, (1, 0, 2)).astype(x.dtype)


def init_gru_params(key, input_size, hidden_size):
    """Deterministic init matching torch.nn.GRU parameter shapes (1 layer)."""
    k = 1.0 / jnp.sqrt(hidden_size)
    k1, k2, k3, k4 = jax.random.split(key, 4)
    w_ih = jax.random.uniform(k1, (3 * hidden_size, input_size), jnp.float32, -k, k)
    w_hh = jax.random.uniform(k2, (3 * hidden_size, hidden_size), jnp.float32, -k, k)
    b_ih = jax.random.uniform(k3, (3 * hidden_size,), jnp.float32, -k, k)
    b_hh = jax.random.uniform(k4, (3 * hidden_size,), jnp.float32, -k, k)
    return w_ih, w_hh, b_ih, b_hh


# TODO(synk): num_layers > 1, bidirectional=True and dropout of nn.GRU are not
# implemented (the module's defaults -- 1 layer, unidirectional, dropout=0 --
# are what forward() exercises).

if __name__ == "__main__":
    key = jax.random.PRNGKey(0)

    # Case 1: small shapes matching the module (batch=2, seq=8, in=32, hidden=32)
    B, T, I, H = 2, 8, 32, 32
    kx, kw, kp, kh = jax.random.split(key, 4)
    x = jax.random.normal(kx, (B, T, I), jnp.float32)
    weight = jax.random.uniform(kw, (B, T), jnp.float32)     # attention weights
    params = init_gru_params(kp, I, H)
    h0 = 0.1 * jax.random.normal(kh, (1, B, H), jnp.float32)

    ref = jax.block_until_ready(aigru_reference(x, weight, params))
    out = jax.block_until_ready(aigru_forward(x, weight, params))
    assert out.shape == (B, T, H)
    assert jnp.allclose(out, ref, atol=2e-5, rtol=1e-5), (
        f"max abs err {jnp.max(jnp.abs(out - ref))}")

    ref_h = jax.block_until_ready(aigru_reference(x, weight, params, h0))
    out_h = jax.block_until_ready(aigru_forward(x, weight, params, h0))
    assert jnp.allclose(out_h, ref_h, atol=2e-5, rtol=1e-5), (
        f"h0 path max abs err {jnp.max(jnp.abs(out_h - ref_h))}")

    # Case 2: exercises batch tiles, multiple time chunks, T padding, H padding
    B2, T2, I2, H2 = 16, 20, 16, 48
    k1, k2, k3 = jax.random.split(kx, 3)
    x2 = jax.random.normal(k1, (B2, T2, I2), jnp.float32)
    w2 = jax.random.uniform(k2, (B2, T2), jnp.float32)
    p2 = init_gru_params(k3, I2, H2)
    ref2 = jax.block_until_ready(aigru_reference(x2, w2, p2))
    out2 = jax.block_until_ready(aigru_forward(x2, w2, p2, time_block=8))
    assert out2.shape == (B2, T2, H2)
    assert jnp.allclose(out2, ref2, atol=2e-5, rtol=1e-5), (
        f"tiled path max abs err {jnp.max(jnp.abs(out2 - ref2))}")

    print("KERNEL_OK")
</pallas_src>

<mosaic_0001>
module attributes {stable_mosaic.version = 11 : i64} {
  func.func @_aigru_kernel(%arg0: i32, %arg1: i32, %arg2: memref<2x8x32xf32, #tpu.memory_space<vmem>>, %arg3: memref<2x8x1xf32, #tpu.memory_space<vmem>>, %arg4: memref<2x128xf32, #tpu.memory_space<vmem>>, %arg5: memref<32x384xf32, #tpu.memory_space<vmem>>, %arg6: memref<128x384xf32, #tpu.memory_space<vmem>>, %arg7: memref<1x384xf32, #tpu.memory_space<vmem>>, %arg8: memref<1x128xf32, #tpu.memory_space<vmem>>, %arg9: memref<2x8x128xf32, #tpu.memory_space<vmem>>, %arg10: memref<8x2x384xf32, #tpu.memory_space<vmem>>, %arg11: memref<8x2x128xf32, #tpu.memory_space<vmem>>, %arg12: memref<2x128xf32, #tpu.memory_space<vmem>>) attributes {dimension_semantics = [#tpu.dimension_semantics<parallel>, #tpu.dimension_semantics<arbitrary>], iteration_bounds = array<i64: 1, 1>, scalar_prefetch = 0 : i64, scratch_operands = 3 : i64, tpu.core_type = #tpu.core_type<tc>, window_params = [{transform_indices = @transform_0, window_bounds = array<i64: 2, 8, 32>}, {transform_indices = @transform_1, window_bounds = array<i64: 2, 8, 1>}, {pipeline_mode = #tpu.pipeline_mode<synchronous>, transform_indices = @transform_2, window_bounds = array<i64: 2, 128>}, {pipeline_mode = #tpu.pipeline_mode<synchronous>, transform_indices = @transform_3, window_bounds = array<i64: 32, 384>}, {pipeline_mode = #tpu.pipeline_mode<synchronous>, transform_indices = @transform_4, window_bounds = array<i64: 128, 384>}, {pipeline_mode = #tpu.pipeline_mode<synchronous>, transform_indices = @transform_5, window_bounds = array<i64: 1, 384>}, {pipeline_mode = #tpu.pipeline_mode<synchronous>, transform_indices = @transform_6, window_bounds = array<i64: 1, 128>}, {transform_indices = @transform_7, window_bounds = array<i64: 2, 8, 128>}]} {
    %c0_i32 = arith.constant 0 : i32
    %0 = arith.cmpi eq, %arg1, %c0_i32 : i32
    %1 = arith.extui %0 : i1 to i32
    %c0_i32_0 = arith.constant 0 : i32
    %2 = arith.cmpi ne, %1, %c0_i32_0 : i32
    scf.if %2 {
      %c0_84 = arith.constant 0 : index
      %c0_85 = arith.constant 0 : index
      %289 = vector.load %arg4[%c0_84, %c0_85] : memref<2x128xf32, #tpu.memory_space<vmem>>, vector<2x128xf32>
      %c0_86 = arith.constant 0 : index
      %c0_87 = arith.constant 0 : index
      %290 = vector.load %arg12[%c0_86, %c0_87] : memref<2x128xf32, #tpu.memory_space<vmem>>, vector<2x128xf32>
      tpu.vector_store %arg12[%c0_86, %c0_87], %289 {strides = array<i32>} : memref<2x128xf32, #tpu.memory_space<vmem>>, vector<2x128xf32>,
    } else {
    }
    %c0 = arith.constant 0 : index
    %c0_1 = arith.constant 0 : index
    %c0_2 = arith.constant 0 : index
    %3 = vector.load %arg2[%c0, %c0_1, %c0_2] : memref<2x8x32xf32, #tpu.memory_space<vmem>>, vector<2x8x32xf32>
    %c0_3 = arith.constant 0 : index
    %c0_4 = arith.constant 0 : index
    %c0_5 = arith.constant 0 : index
    %4 = vector.load %arg3[%c0_3, %c0_4, %c0_5] : memref<2x8x1xf32, #tpu.memory_space<vmem>>, vector<2x8x1xf32>
    %5 = vector.broadcast %4 : vector<2x8x1xf32> to vector<2x8x32xf32>
    %6 = arith.mulf %3, %5 : vector<2x8x32xf32>
    %7 = tpu.transpose %6, [1, 0, 2] : vector<2x8x32xf32> -> vector<8x2x32xf32>
    %8 = vector.shape_cast %7 : vector<8x2x32xf32> to vector<16x32xf32>
    %c0_6 = arith.constant 0 : index
    %c0_7 = arith.constant 0 : index
    %9 = vector.load %arg5[%c0_6, %c0_7] : memref<32x384xf32, #tpu.memory_space<vmem>>, vector<32x384xf32>
    %cst = arith.constant dense<0.000000e+00> : vector<16x384xf32>
    %10 = tpu.matmul %8, %9, %cst {dimension_numbers = #tpu.dot_dimension_numbers<[1], [0], [0], [1], [0, 0, 1, 1], [], []>} : vector<16x32xf32>, vector<32x384xf32>, vector<16x384xf32> -> vector<16x384xf32>
    %c0_8 = arith.constant 0 : index
    %c0_9 = arith.constant 0 : index
    %11 = vector.load %arg7[%c0_8, %c0_9] : memref<1x384xf32, #tpu.memory_space<vmem>>, vector<1x384xf32>
    %12 = vector.broadcast %11 : vector<1x384xf32> to vector<16x384xf32>
    %13 = arith.addf %10, %12 : vector<16x384xf32>
    %14 = vector.shape_cast %13 : vector<16x384xf32> to vector<8x2x384xf32>
    %c0_10 = arith.constant 0 : index
    %c0_11 = arith.constant 0 : index
    %c0_12 = arith.constant 0 : index
    %15 = vector.load %arg10[%c0_10, %c0_11, %c0_12] : memref<8x2x384xf32, #tpu.memory_space<vmem>>, vector<8x2x384xf32>
    tpu.vector_store %arg10[%c0_10, %c0_11, %c0_12], %14 {strides = array<i32>} : memref<8x2x384xf32, #tpu.memory_space<vmem>>, vector<8x2x384xf32>,
    %c0_13 = arith.constant 0 : index
    %c0_14 = arith.constant 0 : index
    %16 = vector.load %arg6[%c0_13, %c0_14] : memref<128x384xf32, #tpu.memory_space<vmem>>, vector<128x384xf32>
    %c0_15 = arith.constant 0 : index
    %c0_16 = arith.constant 0 : index
    %17 = vector.load %arg8[%c0_15, %c0_16] : memref<1x128xf32, #tpu.memory_space<vmem>>, vector<1x128xf32>
    %18 = vector.shape_cast %17 : vector<1x128xf32> to vector<1x128xf32>
    %19 = vector.broadcast %18 : vector<1x128xf32> to vector<2x128xf32>
    %c0_17 = arith.constant 0 : index
    %c0_18 = arith.constant 0 : index
    %20 = vector.load %arg12[%c0_17, %c0_18] : memref<2x128xf32, #tpu.memory_space<vmem>>, vector<2x128xf32>
    %c0_i32_19 = arith.constant 0 : i32
    %21 = arith.index_cast %c0_i32_19 : i32 to index
    %c0_20 = arith.constant 0 : index
    %c0_21 = arith.constant 0 : index
    %22 = vector.load %arg10[%21, %c0_20, %c0_21] : memref<8x2x384xf32, #tpu.memory_space<vmem>>, vector<1x2x384xf32>
    %23 = vector.shape_cast %22 : vector<1x2x384xf32> to vector<2x384xf32>
    %cst_22 = arith.constant dense<0.000000e+00> : vector<2x384xf32>
    %24 = tpu.matmul %20, %16, %cst_22 {dimension_numbers = #tpu.dot_dimension_numbers<[1], [0], [0], [1], [0, 0, 1, 1], [], []>} : vector<2x128xf32>, vector<128x384xf32>, vector<2x384xf32> -> vector<2x384xf32>
    %25 = vector.extract_strided_slice %23 {offsets = [0, 0], sizes = [2, 128], strides = [1, 1]} : vector<2x384xf32> to vector<2x128xf32>
    %26 = vector.extract_strided_slice %24 {offsets = [0, 0], sizes = [2, 128], strides = [1, 1]} : vector<2x384xf32> to vector<2x128xf32>
    %27 = arith.addf %25, %26 : vector<2x128xf32>
    %28 = arith.negf %27 : vector<2x128xf32>
    %29 = math.exp %28 : vector<2x128xf32>
    %cst_23 = arith.constant 1.000000e+00 : f32
    %30 = vector.broadcast %cst_23 : f32 to vector<2x128xf32>
    %31 = arith.addf %30, %29 : vector<2x128xf32>
    %32 = arith.divf %30, %31 : vector<2x128xf32>
    %33 = vector.extract_strided_slice %23 {offsets = [0, 128], sizes = [2, 128], strides = [1, 1]} : vector<2x384xf32> to vector<2x128xf32>
    %34 = vector.extract_strided_slice %24 {offsets = [0, 128], sizes = [2, 128], strides = [1, 1]} : vector<2x384xf32> to vector<2x128xf32>
    %35 = arith.addf %33, %34 : vector<2x128xf32>
    %36 = arith.negf %35 : vector<2x128xf32>
    %37 = math.exp %36 : vector<2x128xf32>
    %cst_24 = arith.constant 1.000000e+00 : f32
    %38 = vector.broadcast %cst_24 : f32 to vector<2x128xf32>
    %39 = arith.addf %38, %37 : vector<2x128xf32>
    %40 = arith.divf %38, %39 : vector<2x128xf32>
    %41 = vector.extract_strided_slice %23 {offsets = [0, 256], sizes = [2, 128], strides = [1, 1]} : vector<2x384xf32> to vector<2x128xf32>
    %42 = vector.extract_strided_slice %24 {offsets = [0, 256], sizes = [2, 128], strides = [1, 1]} : vector<2x384xf32> to vector<2x128xf32>
    %43 = arith.addf %42, %19 : vector<2x128xf32>
    %44 = arith.mulf %32, %43 : vector<2x128xf32>
    %45 = arith.addf %41, %44 : vector<2x128xf32>
    %46 = math.tanh %45 : vector<2x128xf32>
    %47 = arith.subf %20, %46 : vector<2x128xf32>
    %48 = arith.mulf %40, %47 : vector<2x128xf32>
    %49 = arith.addf %46, %48 : vector<2x128xf32>
    %50 = arith.index_cast %c0_i32_19 : i32 to index
    %c0_25 = arith.constant 0 : index
    %c0_26 = arith.constant 0 : index
    %51 = vector.load %arg11[%50, %c0_25, %c0_26] : memref<8x2x128xf32, #tpu.memory_space<vmem>>, vector<1x2x128xf32>
    %52 = vector.shape_cast %51 : vector<1x2x128xf32> to vector<2x128xf32>
    %53 = vector.shape_cast %49 : vector<2x128xf32> to vector<1x2x128xf32>
    tpu.vector_store %arg11[%50, %c0_25, %c0_26], %53 {strides = array<i32>} : memref<8x2x128xf32, #tpu.memory_space<vmem>>, vector<1x2x128xf32>,
    %c1_i32 = arith.constant 1 : i32
    %54 = arith.index_cast %c1_i32 : i32 to index
    %c0_27 = arith.constant 0 : index
    %c0_28 = arith.constant 0 : index
    %55 = vector.load %arg10[%54, %c0_27, %c0_28] : memref<8x2x384xf32, #tpu.memory_space<vmem>>, vector<1x2x384xf32>
    %56 = vector.shape_cast %55 : vector<1x2x384xf32> to vector<2x384xf32>
    %cst_29 = arith.constant dense<0.000000e+00> : vector<2x384xf32>
    %57 = tpu.matmul %49, %16, %cst_29 {dimension_numbers = #tpu.dot_dimension_numbers<[1], [0], [0], [1], [0, 0, 1, 1], [], []>} : vector<2x128xf32>, vector<128x384xf32>, vector<2x384xf32> -> vector<2x384xf32>
    %58 = vector.extract_strided_slice %56 {offsets = [0, 0], sizes = [2, 128], strides = [1, 1]} : vector<2x384xf32> to vector<2x128xf32>
    %59 = vector.extract_strided_slice %57 {offsets = [0, 0], sizes = [2, 128], strides = [1, 1]} : vector<2x384xf32> to vector<2x128xf32>
    %60 = arith.addf %58, %59 : vector<2x128xf32>
    %61 = arith.negf %60 : vector<2x128xf32>
    %62 = math.exp %61 : vector<2x128xf32>
    %cst_30 = arith.constant 1.000000e+00 : f32
    %63 = vector.broadcast %cst_30 : f32 to vector<2x128xf32>
    %64 = arith.addf %63, %62 : vector<2x128xf32>
    %65 = arith.divf %63, %64 : vector<2x128xf32>
    %66 = vector.extract_strided_slice %56 {offsets = [0, 128], sizes = [2, 128], strides = [1, 1]} : vector<2x384xf32> to vector<2x128xf32>
    %67 = vector.extract_strided_slice %57 {offsets = [0, 128], sizes = [2, 128], strides = [1, 1]} : vector<2x384xf32> to vector<2x128xf32>
    %68 = arith.addf %66, %67 : vector<2x128xf32>
    %69 = arith.negf %68 : vector<2x128xf32>
    %70 = math.exp %69 : vector<2x128xf32>
    %cst_31 = arith.constant 1.000000e+00 : f32
    %71 = vector.broadcast %cst_31 : f32 to vector<2x128xf32>
    %72 = arith.addf %71, %70 : vector<2x128xf32>
    %73 = arith.divf %71, %72 : vector<2x128xf32>
    %74 = vector.extract_strided_slice %56 {offsets = [0, 256], sizes = [2, 128], strides = [1, 1]} : vector<2x384xf32> to vector<2x128xf32>
    %75 = vector.extract_strided_slice %57 {offsets = [0, 256], sizes = [2, 128], strides = [1, 1]} : vector<2x384xf32> to vector<2x128xf32>
    %76 = arith.addf %75, %19 : vector<2x128xf32>
    %77 = arith.mulf %65, %76 : vector<2x128xf32>
    %78 = arith.addf %74, %77 : vector<2x128xf32>
    %79 = math.tanh %78 : vector<2x128xf32>
    %80 = arith.subf %49, %79 : vector<2x128xf32>
    %81 = arith.mulf %73, %80 : vector<2x128xf32>
    %82 = arith.addf %79, %81 : vector<2x128xf32>
    %83 = arith.index_cast %c1_i32 : i32 to index
    %c0_32 = arith.constant 0 : index
    %c0_33 = arith.constant 0 : index
    %84 = vector.load %arg11[%83, %c0_32, %c0_33] : memref<8x2x128xf32, #tpu.memory_space<vmem>>, vector<1x2x128xf32>
    %85 = vector.shape_cast %84 : vector<1x2x128xf32> to vector<2x128xf32>
    %86 = vector.shape_cast %82 : vector<2x128xf32> to vector<1x2x128xf32>
    tpu.vector_store %arg11[%83, %c0_32, %c0_33], %86 {strides = array<i32>} : memref<8x2x128xf32, #tpu.memory_space<vmem>>, vector<1x2x128xf32>,
    %c2_i32 = arith.constant 2 : i32
    %87 = arith.index_cast %c2_i32 : i32 to index
    %c0_34 = arith.constant 0 : index
    %c0_35 = arith.constant 0 : index
    %88 = vector.load %arg10[%87, %c0_34, %c0_35] : memref<8x2x384xf32, #tpu.memory_space<vmem>>, vector<1x2x384xf32>
    %89 = vector.shape_cast %88 : vector<1x2x384xf32> to vector<2x384xf32>
    %cst_36 = arith.constant dense<0.000000e+00> : vector<2x384xf32>
    %90 = tpu.matmul %82, %16, %cst_36 {dimension_numbers = #tpu.dot_dimension_numbers<[1], [0], [0], [1], [0, 0, 1, 1], [], []>} : vector<2x128xf32>, vector<128x384xf32>, vector<2x384xf32> -> vector<2x384xf32>
    %91 = vector.extract_strided_slice %89 {offsets = [0, 0], sizes = [2, 128], strides = [1, 1]} : vector<2x384xf32> to vector<2x128xf32>
    %92 = vector.extract_strided_slice %90 {offsets = [0, 0], sizes = [2, 128], strides = [1, 1]} : vector<2x384xf32> to vector<2x128xf32>
    %93 = arith.addf %91, %92 : vector<2x128xf32>
    %94 = arith.negf %93 : vector<2x128xf32>
    %95 = math.exp %94 : vector<2x128xf32>
    %cst_37 = arith.constant 1.000000e+00 : f32
    %96 = vector.broadcast %cst_37 : f32 to vector<2x128xf32>
    %97 = arith.addf %96, %95 : vector<2x128xf32>
    %98 = arith.divf %96, %97 : vector<2x128xf32>
    %99 = vector.extract_strided_slice %89 {offsets = [0, 128], sizes = [2, 128], strides = [1, 1]} : vector<2x384xf32> to vector<2x128xf32>
    %100 = vector.extract_strided_slice %90 {offsets = [0, 128], sizes = [2, 128], strides = [1, 1]} : vector<2x384xf32> to vector<2x128xf32>
    %101 = arith.addf %99, %100 : vector<2x128xf32>
    %102 = arith.negf %101 : vector<2x128xf32>
    %103 = math.exp %102 : vector<2x128xf32>
    %cst_38 = arith.constant 1.000000e+00 : f32
    %104 = vector.broadcast %cst_38 : f32 to vector<2x128xf32>
    %105 = arith.addf %104, %103 : vector<2x128xf32>
    %106 = arith.divf %104, %105 : vector<2x128xf32>
    %107 = vector.extract_strided_slice %89 {offsets = [0, 256], sizes = [2, 128], strides = [1, 1]} : vector<2x384xf32> to vector<2x128xf32>
    %108 = vector.extract_strided_slice %90 {offsets = [0, 256], sizes = [2, 128], strides = [1, 1]} : vector<2x384xf32> to vector<2x128xf32>
    %109 = arith.addf %108, %19 : vector<2x128xf32>
    %110 = arith.mulf %98, %109 : vector<2x128xf32>
    %111 = arith.addf %107, %110 : vector<2x128xf32>
    %112 = math.tanh %111 : vector<2x128xf32>
    %113 = arith.subf %82, %112 : vector<2x128xf32>
    %114 = arith.mulf %106, %113 : vector<2x128xf32>
    %115 = arith.addf %112, %114 : vector<2x128xf32>
    %116 = arith.index_cast %c2_i32 : i32 to index
    %c0_39 = arith.constant 0 : index
    %c0_40 = arith.constant 0 : index
    %117 = vector.load %arg11[%116, %c0_39, %c0_40] : memref<8x2x128xf32, #tpu.memory_space<vmem>>, vector<1x2x128xf32>
    %118 = vector.shape_cast %117 : vector<1x2x128xf32> to vector<2x128xf32>
    %119 = vector.shape_cast %115 : vector<2x128xf32> to vector<1x2x128xf32>
    tpu.vector_store %arg11[%116, %c0_39, %c0_40], %119 {strides = array<i32>} : memref<8x2x128xf32, #tpu.memory_space<vmem>>, vector<1x2x128xf32>,
    %c3_i32 = arith.constant 3 : i32
    %120 = arith.index_cast %c3_i32 : i32 to index
    %c0_41 = arith.constant 0 : index
    %c0_42 = arith.constant 0 : index
    %121 = vector.load %arg10[%120, %c0_41, %c0_42] : memref<8x2x384xf32, #tpu.memory_space<vmem>>, vector<1x2x384xf32>
    %122 = vector.shape_cast %121 : vector<1x2x384xf32> to vector<2x384xf32>
    %cst_43 = arith.constant dense<0.000000e+00> : vector<2x384xf32>
    %123 = tpu.matmul %115, %16, %cst_43 {dimension_numbers = #tpu.dot_dimension_numbers<[1], [0], [0], [1], [0, 0, 1, 1], [], []>} : vector<2x128xf32>, vector<128x384xf32>, vector<2x384xf32> -> vector<2x384xf32>
    %124 = vector.extract_strided_slice %122 {offsets = [0, 0], sizes = [2, 128], strides = [1, 1]} : vector<2x384xf32> to vector<2x128xf32>
    %125 = vector.extract_strided_slice %123 {offsets = [0, 0], sizes = [2, 128], strides = [1, 1]} : vector<2x384xf32> to vector<2x128xf32>
    %126 = arith.addf %124, %125 : vector<2x128xf32>
    %127 = arith.negf %126 : vector<2x128xf32>
    %128 = math.exp %127 : vector<2x128xf32>
    %cst_44 = arith.constant 1.000000e+00 : f32
    %129 = vector.broadcast %cst_44 : f32 to vector<2x128xf32>
    %130 = arith.addf %129, %128 : vector<2x128xf32>
    %131 = arith.divf %129, %130 : vector<2x128xf32>
    %132 = vector.extract_strided_slice %122 {offsets = [0, 128], sizes = [2, 128], strides = [1, 1]} : vector<2x384xf32> to vector<2x128xf32>
    %133 = vector.extract_strided_slice %123 {offsets = [0, 128], sizes = [2, 128], strides = [1, 1]} : vector<2x384xf32> to vector<2x128xf32>
    %134 = arith.addf %132, %133 : vector<2x128xf32>
    %135 = arith.negf %134 : vector<2x128xf32>
    %136 = math.exp %135 : vector<2x128xf32>
    %cst_45 = arith.constant 1.000000e+00 : f32
    %137 = vector.broadcast %cst_45 : f32 to vector<2x128xf32>
    %138 = arith.addf %137, %136 : vector<2x128xf32>
    %139 = arith.divf %137, %138 : vector<2x128xf32>
    %140 = vector.extract_strided_slice %122 {offsets = [0, 256], sizes = [2, 128], strides = [1, 1]} : vector<2x384xf32> to vector<2x128xf32>
    %141 = vector.extract_strided_slice %123 {offsets = [0, 256], sizes = [2, 128], strides = [1, 1]} : vector<2x384xf32> to vector<2x128xf32>
    %142 = arith.addf %141, %19 : vector<2x128xf32>
    %143 = arith.mulf %131, %142 : vector<2x128xf32>
    %144 = arith.addf %140, %143 : vector<2x128xf32>
    %145 = math.tanh %144 : vector<2x128xf32>
    %146 = arith.subf %115, %145 : vector<2x128xf32>
    %147 = arith.mulf %139, %146 : vector<2x128xf32>
    %148 = arith.addf %145, %147 : vector<2x128xf32>
    %149 = arith.index_cast %c3_i32 : i32 to index
    %c0_46 = arith.constant 0 : index
    %c0_47 = arith.constant 0 : index
    %150 = vector.load %arg11[%149, %c0_46, %c0_47] : memref<8x2x128xf32, #tpu.memory_space<vmem>>, vector<1x2x128xf32>
    %151 = vector.shape_cast %150 : vector<1x2x128xf32> to vector<2x128xf32>
    %152 = vector.shape_cast %148 : vector<2x128xf32> to vector<1x2x128xf32>
    tpu.vector_store %arg11[%149, %c0_46, %c0_47], %152 {strides = array<i32>} : memref<8x2x128xf32, #tpu.memory_space<vmem>>, vector<1x2x128xf32>,
    %c4_i32 = arith.constant 4 : i32
    %153 = arith.index_cast %c4_i32 : i32 to index
    %c0_48 = arith.constant 0 : index
    %c0_49 = arith.constant 0 : index
    %154 = vector.load %arg10[%153, %c0_48, %c0_49] : memref<8x2x384xf32, #tpu.memory_space<vmem>>, vector<1x2x384xf32>
    %155 = vector.shape_cast %154 : vector<1x2x384xf32> to vector<2x384xf32>
    %cst_50 = arith.constant dense<0.000000e+00> : vector<2x384xf32>
    %156 = tpu.matmul %148, %16, %cst_50 {dimension_numbers = #tpu.dot_dimension_numbers<[1], [0], [0], [1], [0, 0, 1, 1], [], []>} : vector<2x128xf32>, vector<128x384xf32>, vector<2x384xf32> -> vector<2x384xf32>
    %157 = vector.extract_strided_slice %155 {offsets = [0, 0], sizes = [2, 128], strides = [1, 1]} : vector<2x384xf32> to vector<2x128xf32>
    %158 = vector.extract_strided_slice %156 {offsets = [0, 0], sizes = [2, 128], strides = [1, 1]} : vector<2x384xf32> to vector<2x128xf32>
    %159 = arith.addf %157, %158 : vector<2x128xf32>
    %160 = arith.negf %159 : vector<2x128xf32>
    %161 = math.exp %160 : vector<2x128xf32>
    %cst_51 = arith.constant 1.000000e+00 : f32
    %162 = vector.broadcast %cst_51 : f32 to vector<2x128xf32>
    %163 = arith.addf %162, %161 : vector<2x128xf32>
    %164 = arith.divf %162, %163 : vector<2x128xf32>
    %165 = vector.extract_strided_slice %155 {offsets = [0, 128], sizes = [2, 128], strides = [1, 1]} : vector<2x384xf32> to vector<2x128xf32>
    %166 = vector.extract_strided_slice %156 {offsets = [0, 128], sizes = [2, 128], strides = [1, 1]} : vector<2x384xf32> to vector<2x128xf32>
    %167 = arith.addf %165, %166 : vector<2x128xf32>
    %168 = arith.negf %167 : vector<2x128xf32>
    %169 = math.exp %168 : vector<2x128xf32>
    %cst_52 = arith.constant 1.000000e+00 : f32
    %170 = vector.broadcast %cst_52 : f32 to vector<2x128xf32>
    %171 = arith.addf %170, %169 : vector<2x128xf32>
    %172 = arith.divf %170, %171 : vector<2x128xf32>
    %173 = vector.extract_strided_slice %155 {offsets = [0, 256], sizes = [2, 128], strides = [1, 1]} : vector<2x384xf32> to vector<2x128xf32>
    %174 = vector.extract_strided_slice %156 {offsets = [0, 256], sizes = [2, 128], strides = [1, 1]} : vector<2x384xf32> to vector<2x128xf32>
    %175 = arith.addf %174, %19 : vector<2x128xf32>
    %176 = arith.mulf %164, %175 : vector<2x128xf32>
    %177 = arith.addf %173, %176 : vector<2x128xf32>
    %178 = math.tanh %177 : vector<2x128xf32>
    %179 = arith.subf %148, %178 : vector<2x128xf32>
    %180 = arith.mulf %172, %179 : vector<2x128xf32>
    %181 = arith.addf %178, %180 : vector<2x128xf32>
    %182 = arith.index_cast %c4_i32 : i32 to index
    %c0_53 = arith.constant 0 : index
    %c0_54 = arith.constant 0 : index
    %183 = vector.load %arg11[%182, %c0_53, %c0_54] : memref<8x2x128xf32, #tpu.memory_space<vmem>>, vector<1x2x128xf32>
    %184 = vector.shape_cast %183 : vector<1x2x128xf32> to vector<2x128xf32>
    %185 = vector.shape_cast %181 : vector<2x128xf32> to vector<1x2x128xf32>
    tpu.vector_store %arg11[%182, %c0_53, %c0_54], %185 {strides = array<i32>} : memref<8x2x128xf32, #tpu.memory_space<vmem>>, vector<1x2x128xf32>,
    %c5_i32 = arith.constant 5 : i32
    %186 = arith.index_cast %c5_i32 : i32 to index
    %c0_55 = arith.constant 0 : index
    %c0_56 = arith.constant 0 : index
    %187 = vector.load %arg10[%186, %c0_55, %c0_56] : memref<8x2x384xf32, #tpu.memory_space<vmem>>, vector<1x2x384xf32>
    %188 = vector.shape_cast %187 : vector<1x2x384xf32> to vector<2x384xf32>
    %cst_57 = arith.constant dense<0.000000e+00> : vector<2x384xf32>
    %189 = tpu.matmul %181, %16, %cst_57 {dimension_numbers = #tpu.dot_dimension_numbers<[1], [0], [0], [1], [0, 0, 1, 1], [], []>} : vector<2x128xf32>, vector<128x384xf32>, vector<2x384xf32> -> vector<2x384xf32>
    %190 = vector.extract_strided_slice %188 {offsets = [0, 0], sizes = [2, 128], strides = [1, 1]} : vector<2x384xf32> to vector<2x128xf32>
    %191 = vector.extract_strided_slice %189 {offsets = [0, 0], sizes = [2, 128], strides = [1, 1]} : vector<2x384xf32> to vector<2x128xf32>
    %192 = arith.addf %190, %191 : vector<2x128xf32>
    %193 = arith.negf %192 : vector<2x128xf32>
    %194 = math.exp %193 : vector<2x128xf32>
    %cst_58 = arith.constant 1.000000e+00 : f32
    %195 = vector.broadcast %cst_58 : f32 to vector<2x128xf32>
    %196 = arith.addf %195, %194 : vector<2x128xf32>
    %197 = arith.divf %195, %196 : vector<2x128xf32>
    %198 = vector.extract_strided_slice %188 {offsets = [0, 128], sizes = [2, 128], strides = [1, 1]} : vector<2x384xf32> to vector<2x128xf32>
    %199 = vector.extract_strided_slice %189 {offsets = [0, 128], sizes = [2, 128], strides = [1, 1]} : vector<2x384xf32> to vector<2x128xf32>
    %200 = arith.addf %198, %199 : vector<2x128xf32>
    %201 = arith.negf %200 : vector<2x128xf32>
    %202 = math.exp %201 : vector<2x128xf32>
    %cst_59 = arith.constant 1.000000e+00 : f32
    %203 = vector.broadcast %cst_59 : f32 to vector<2x128xf32>
    %204 = arith.addf %203, %202 : vector<2x128xf32>
    %205 = arith.divf %203, %204 : vector<2x128xf32>
    %206 = vector.extract_strided_slice %188 {offsets = [0, 256], sizes = [2, 128], strides = [1, 1]} : vector<2x384xf32> to vector<2x128xf32>
    %207 = vector.extract_strided_slice %189 {offsets = [0, 256], sizes = [2, 128], strides = [1, 1]} : vector<2x384xf32> to vector<2x128xf32>
    %208 = arith.addf %207, %19 : vector<2x128xf32>
    %209 = arith.mulf %197, %208 : vector<2x128xf32>
    %210 = arith.addf %206, %209 : vector<2x128xf32>
    %211 = math.tanh %210 : vector<2x128xf32>
    %212 = arith.subf %181, %211 : vector<2x128xf32>
    %213 = arith.mulf %205, %212 : vector<2x128xf32>
    %214 = arith.addf %211, %213 : vector<2x128xf32>
    %215 = arith.index_cast %c5_i32 : i32 to index
    %c0_60 = arith.constant 0 : index
    %c0_61 = arith.constant 0 : index
    %216 = vector.load %arg11[%215, %c0_60, %c0_61] : memref<8x2x128xf32, #tpu.memory_space<vmem>>, vector<1x2x128xf32>
    %217 = vector.shape_cast %216 : vector<1x2x128xf32> to vector<2x128xf32>
    %218 = vector.shape_cast %214 : vector<2x128xf32> to vector<1x2x128xf32>
    tpu.vector_store %arg11[%215, %c0_60, %c0_61], %218 {strides = array<i32>} : memref<8x2x128xf32, #tpu.memory_space<vmem>>, vector<1x2x128xf32>,
    %c6_i32 = arith.constant 6 : i32
    %219 = arith.index_cast %c6_i32 : i32 to index
    %c0_62 = arith.constant 0 : index
    %c0_63 = arith.constant 0 : index
    %220 = vector.load %arg10[%219, %c0_62, %c0_63] : memref<8x2x384xf32, #tpu.memory_space<vmem>>, vector<1x2x384xf32>
    %221 = vector.shape_cast %220 : vector<1x2x384xf32> to vector<2x384xf32>
    %cst_64 = arith.constant dense<0.000000e+00> : vector<2x384xf32>
    %222 = tpu.matmul %214, %16, %cst_64 {dimension_numbers = #tpu.dot_dimension_numbers<[1], [0], [0], [1], [0, 0, 1, 1], [], []>} : vector<2x128xf32>, vector<128x384xf32>, vector<2x384xf32> -> vector<2x384xf32>
    %223 = vector.extract_strided_slice %221 {offsets = [0, 0], sizes = [2, 128], strides = [1, 1]} : vector<2x384xf32> to vector<2x128xf32>
    %224 = vector.extract_strided_slice %222 {offsets = [0, 0], sizes = [2, 128], strides = [1, 1]} : vector<2x384xf32> to vector<2x128xf32>
    %225 = arith.addf %223, %224 : vector<2x128xf32>
    %226 = arith.negf %225 : vector<2x128xf32>
    %227 = math.exp %226 : vector<2x128xf32>
    %cst_65 = arith.constant 1.000000e+00 : f32
    %228 = vector.broadcast %cst_65 : f32 to vector<2x128xf32>
    %229 = arith.addf %228, %227 : vector<2x128xf32>
    %230 = arith.divf %228, %229 : vector<2x128xf32>
    %231 = vector.extract_strided_slice %221 {offsets = [0, 128], sizes = [2, 128], strides = [1, 1]} : vector<2x384xf32> to vector<2x128xf32>
    %232 = vector.extract_strided_slice %222 {offsets = [0, 128], sizes = [2, 128], strides = [1, 1]} : vector<2x384xf32> to vector<2x128xf32>
    %233 = arith.addf %231, %232 : vector<2x128xf32>
    %234 = arith.negf %233 : vector<2x128xf32>
    %235 = math.exp %234 : vector<2x128xf32>
    %cst_66 = arith.constant 1.000000e+00 : f32
    %236 = vector.broadcast %cst_66 : f32 to vector<2x128xf32>
    %237 = arith.addf %236, %235 : vector<2x128xf32>
    %238 = arith.divf %236, %237 : vector<2x128xf32>
    %239 = vector.extract_strided_slice %221 {offsets = [0, 256], sizes = [2, 128], strides = [1, 1]} : vector<2x384xf32> to vector<2x128xf32>
    %240 = vector.extract_strided_slice %222 {offsets = [0, 256], sizes = [2, 128], strides = [1, 1]} : vector<2x384xf32> to vector<2x128xf32>
    %241 = arith.addf %240, %19 : vector<2x128xf32>
    %242 = arith.mulf %230, %241 : vector<2x128xf32>
    %243 = arith.addf %239, %242 : vector<2x128xf32>
    %244 = math.tanh %243 : vector<2x128xf32>
    %245 = arith.subf %214, %244 : vector<2x128xf32>
    %246 = arith.mulf %238, %245 : vector<2x128xf32>
    %247 = arith.addf %244, %246 : vector<2x128xf32>
    %248 = arith.index_cast %c6_i32 : i32 to index
    %c0_67 = arith.constant 0 : index
    %c0_68 = arith.constant 0 : index
    %249 = vector.load %arg11[%248, %c0_67, %c0_68] : memref<8x2x128xf32, #tpu.memory_space<vmem>>, vector<1x2x128xf32>
    %250 = vector.shape_cast %249 : vector<1x2x128xf32> to vector<2x128xf32>
    %251 = vector.shape_cast %247 : vector<2x128xf32> to vector<1x2x128xf32>
    tpu.vector_store %arg11[%248, %c0_67, %c0_68], %251 {strides = array<i32>} : memref<8x2x128xf32, #tpu.memory_space<vmem>>, vector<1x2x128xf32>,
    %c7_i32 = arith.constant 7 : i32
    %252 = arith.index_cast %c7_i32 : i32 to index
    %c0_69 = arith.constant 0 : index
    %c0_70 = arith.constant 0 : index
    %253 = vector.load %arg10[%252, %c0_69, %c0_70] : memref<8x2x384xf32, #tpu.memory_space<vmem>>, vector<1x2x384xf32>
    %254 = vector.shape_cast %253 : vector<1x2x384xf32> to vector<2x384xf32>
    %cst_71 = arith.constant dense<0.000000e+00> : vector<2x384xf32>
    %255 = tpu.matmul %247, %16, %cst_71 {dimension_numbers = #tpu.dot_dimension_numbers<[1], [0], [0], [1], [0, 0, 1, 1], [], []>} : vector<2x128xf32>, vector<128x384xf32>, vector<2x384xf32> -> vector<2x384xf32>
    %256 = vector.extract_strided_slice %254 {offsets = [0, 0], sizes = [2, 128], strides = [1, 1]} : vector<2x384xf32> to vector<2x128xf32>
    %257 = vector.extract_strided_slice %255 {offsets = [0, 0], sizes = [2, 128], strides = [1, 1]} : vector<2x384xf32> to vector<2x128xf32>
    %258 = arith.addf %256, %257 : vector<2x128xf32>
    %259 = arith.negf %258 : vector<2x128xf32>
    %260 = math.exp %259 : vector<2x128xf32>
    %cst_72 = arith.constant 1.000000e+00 : f32
    %261 = vector.broadcast %cst_72 : f32 to vector<2x128xf32>
    %262 = arith.addf %261, %260 : vector<2x128xf32>
    %263 = arith.divf %261, %262 : vector<2x128xf32>
    %264 = vector.extract_strided_slice %254 {offsets = [0, 128], sizes = [2, 128], strides = [1, 1]} : vector<2x384xf32> to vector<2x128xf32>
    %265 = vector.extract_strided_slice %255 {offsets = [0, 128], sizes = [2, 128], strides = [1, 1]} : vector<2x384xf32> to vector<2x128xf32>
    %266 = arith.addf %264, %265 : vector<2x128xf32>
    %267 = arith.negf %266 : vector<2x128xf32>
    %268 = math.exp %267 : vector<2x128xf32>
    %cst_73 = arith.constant 1.000000e+00 : f32
    %269 = vector.broadcast %cst_73 : f32 to vector<2x128xf32>
    %270 = arith.addf %269, %268 : vector<2x128xf32>
    %271 = arith.divf %269, %270 : vector<2x128xf32>
    %272 = vector.extract_strided_slice %254 {offsets = [0, 256], sizes = [2, 128], strides = [1, 1]} : vector<2x384xf32> to vector<2x128xf32>
    %273 = vector.extract_strided_slice %255 {offsets = [0, 256], sizes = [2, 128], strides = [1, 1]} : vector<2x384xf32> to vector<2x128xf32>
    %274 = arith.addf %273, %19 : vector<2x128xf32>
    %275 = arith.mulf %263, %274 : vector<2x128xf32>
    %276 = arith.addf %272, %275 : vector<2x128xf32>
    %277 = math.tanh %276 : vector<2x128xf32>
    %278 = arith.subf %247, %277 : vector<2x128xf32>
    %279 = arith.mulf %271, %278 : vector<2x128xf32>
    %280 = arith.addf %277, %279 : vector<2x128xf32>
    %281 = arith.index_cast %c7_i32 : i32 to index
    %c0_74 = arith.constant 0 : index
    %c0_75 = arith.constant 0 : index
    %282 = vector.load %arg11[%281, %c0_74, %c0_75] : memref<8x2x128xf32, #tpu.memory_space<vmem>>, vector<1x2x128xf32>
    %283 = vector.shape_cast %282 : vector<1x2x128xf32> to vector<2x128xf32>
    %284 = vector.shape_cast %280 : vector<2x128xf32> to vector<1x2x128xf32>
    tpu.vector_store %arg11[%281, %c0_74, %c0_75], %284 {strides = array<i32>} : memref<8x2x128xf32, #tpu.memory_space<vmem>>, vector<1x2x128xf32>,
    %c8_i32 = arith.constant 8 : i32
    %c0_76 = arith.constant 0 : index
    %c0_77 = arith.constant 0 : index
    %285 = vector.load %arg12[%c0_76, %c0_77] : memref<2x128xf32, #tpu.memory_space<vmem>>, vector<2x128xf32>
    tpu.vector_store %arg12[%c0_76, %c0_77], %280 {strides = array<i32>} : memref<2x128xf32, #tpu.memory_space<vmem>>, vector<2x128xf32>,
    %c0_78 = arith.constant 0 : index
    %c0_79 = arith.constant 0 : index
    %c0_80 = arith.constant 0 : index
    %286 = vector.load %arg11[%c0_78, %c0_79, %c0_80] : memref<8x2x128xf32, #tpu.memory_space<vmem>>, vector<8x2x128xf32>
    %287 = tpu.transpose %286, [1, 0, 2] : vector<8x2x128xf32> -> vector<2x8x128xf32>
    %c0_81 = arith.constant 0 : index
    %c0_82 = arith.constant 0 : index
    %c0_83 = arith.constant 0 : index
    %288 = vector.load %arg9[%c0_81, %c0_82, %c0_83] : memref<2x8x128xf32, #tpu.memory_space<vmem>>, vector<2x8x128xf32>
    tpu.vector_store %arg9[%c0_81, %c0_82, %c0_83], %287 {strides = array<i32>} : memref<2x8x128xf32, #tpu.memory_space<vmem>>, vector<2x8x128xf32>,
    return
  }
  func.func @transform_0(%arg0: i32, %arg1: i32) -> (i32, i32, i32) {
    %c0_i32 = arith.constant 0 : i32
    %c0_i32_0 = arith.constant 0 : i32
    return %arg0, %arg1, %c0_i32 : i32, i32, i32
  }
  func.func @transform_1(%arg0: i32, %arg1: i32) -> (i32, i32, i32) {
    %c0_i32 = arith.constant 0 : i32
    %c0_i32_0 = arith.constant 0 : i32
    return %arg0, %arg1, %c0_i32 : i32, i32, i32
  }
  func.func @transform_2(%arg0: i32, %arg1: i32) -> (i32, i32) {
    %c0_i32 = arith.constant 0 : i32
    %c0_i32_0 = arith.constant 0 : i32
    return %arg0, %c0_i32 : i32, i32
  }
  func.func @transform_3(%arg0: i32, %arg1: i32) -> (i32, i32) {
    %c0_i32 = arith.constant 0 : i32
    %c0_i32_0 = arith.constant 0 : i32
    %c0_i32_1 = arith.constant 0 : i32
    return %c0_i32, %c0_i32_0 : i32, i32
  }
  func.func @transform_4(%arg0: i32, %arg1: i32) -> (i32, i32) {
    %c0_i32 = arith.constant 0 : i32
    %c0_i32_0 = arith.constant 0 : i32
    %c0_i32_1 = arith.constant 0 : i32
    return %c0_i32, %c0_i32_0 : i32, i32
  }
  func.func @transform_5(%arg0: i32, %arg1: i32) -> (i32, i32) {
    %c0_i32 = arith.constant 0 : i32
    %c0_i32_0 = arith.constant 0 : i32
    %c0_i32_1 = arith.constant 0 : i32
    return %c0_i32, %c0_i32_0 : i32, i32
  }
  func.func @transform_6(%arg0: i32, %arg1: i32) -> (i32, i32) {
    %c0_i32 = arith.constant 0 : i32
    %c0_i32_0 = arith.constant 0 : i32
    %c0_i32_1 = arith.constant 0 : i32
    return %c0_i32, %c0_i32_0 : i32, i32
  }
  func.func @transform_7(%arg0: i32, %arg1: i32) -> (i32, i32, i32) {
    %c0_i32 = arith.constant 0 : i32
    %c0_i32_0 = arith.constant 0 : i32
    return %arg0, %arg1, %c0_i32 : i32, i32, i32
  }
}

</mosaic_0001>

<llo_original>
// kernel: tpu_custom_call.1
$region0: #{tpu_custom_call.1}
  #allocation0 [shape = 'u32[]', space=smem, size = 0x4, offset = 0x4, fixed_abs, tag = 'smem constant byte address 0x4 - core index']
  #allocation1 [shape = 'u32[144,128]{1,0:T(1,128)}', space=vmem, size = 0x12000, scoped, tag = 'internal scratch']
  #allocation2 [shape = 'f32[8,2,384]{2,1,0:T(2,128)}', space=vmem, size = 0x6000, scoped, tag = 'scratch operand']
  #allocation3 [shape = 'f32[8,2,128]{2,1,0:T(2,128)}', space=vmem, size = 0x2000, scoped, tag = 'scratch operand']
  #allocation4 [shape = 'f32[2,128]{1,0:T(2,128)}', space=vmem, size = 0x400, scoped, tag = 'scratch operand']
  %s0 = inlined_call_operand.vmem [shape: f32[2,8,32], index: 0, kind: input, shape index: {}]
  %s1 = inlined_call_operand.vmem [shape: f32[2,8,1], index: 1, kind: input, shape index: {}]
  %s2 = inlined_call_operand.vmem [shape: f32[2,128], index: 2, kind: input, shape index: {}]
  %s3 = inlined_call_operand.hbm [shape: f32[32,384], index: 3, kind: input, shape index: {}]
  %s4 = inlined_call_operand.hbm [shape: f32[128,384], index: 4, kind: input, shape index: {}]
  %s5 = inlined_call_operand.vmem [shape: f32[1,384], index: 5, kind: input, shape index: {}]
  %s6 = inlined_call_operand.vmem [shape: f32[1,128], index: 6, kind: input, shape index: {}]
  %s7 = inlined_call_operand.hbm [shape: f32[2,8,128], index: 7, kind: output, shape index: {}]
  %s8 = sld [smem:[#allocation0]]
  $region50: #{tpu_custom_call.1} parent=0
    _
  %s10 = ssub.s32 1, %s8
  %s11 = scalar_select 0, %s10, %s8
  $region1: #{tpu_custom_call.1} parent=0
    #allocation5 [shape = 'u8[49152]{0}', space=vmem, size = 0xc000, scoped, tag = 'input window, operand 3, single buffered']
    #allocation6 [shape = 's32[1]{0}', space=sflag, size = 0x4, scoped, tag = 'scoped memory for tpu_custom_call.1']
    #allocation7 [shape = 's32[1]{0}', space=sflag, size = 0x4, scoped, tag = 'scoped memory for tpu_custom_call.1']
    #allocation8 [shape = 'u8[196608]{0}', space=vmem, size = 0x30000, scoped, tag = 'input window, operand 4, single buffered']
    #allocation9 [shape = 's32[1]{0}', space=sflag, size = 0x4, scoped, tag = 'scoped memory for tpu_custom_call.1']
    #allocation10 [shape = 'u8[8192]{0}', space=vmem, size = 0x2000, scoped, tag = 'output window, operand 0, single buffered']
    %12 = vsyncpa [#allocation6], 0
    %13 = vsyncpa [#allocation9], 0
    %14 = vsyncpa [#allocation7], 0
    // Predicated region
    $region2: #{tpu_custom_call.1} parent=1 // pred_check
      _
    $region3: #{tpu_custom_call.1} parent=1 // pred_check_branch
      %16 = sbr.rel (0) target = $region5
    $region4: #{tpu_custom_call.1} parent=1 // pred_region
      _
    $region5: #{tpu_custom_call.1} parent=1 // pred_fallthru
      _
    // Predicated region
    $region6: #{tpu_custom_call.1} parent=1 // pred_check
      _
    $region7: #{tpu_custom_call.1} parent=1 // pred_check_branch
      %18 = sbr.rel (0) target = $region9
    $region8: #{tpu_custom_call.1} parent=1 // pred_region
      _
    $region9: #{tpu_custom_call.1} parent=1 // pred_fallthru
      _
    // Predicated region
    $region10: #{tpu_custom_call.1} parent=1 // pred_check
      _
    $region11: #{tpu_custom_call.1} parent=1 // pred_check_branch
      %20 = sbr.rel (0) target = $region13
    $region12: #{tpu_custom_call.1} parent=1 // pred_region
      _
    $region13: #{tpu_custom_call.1} parent=1 // pred_fallthru
      _
    // Predicated region
    $region14: #{tpu_custom_call.1} parent=1 // pred_check
      _
    $region15: #{tpu_custom_call.1} parent=1 // pred_check_branch
      %22 = sbr.rel (0) target = $region17
    $region16: #{tpu_custom_call.1} parent=1 // pred_region
      %s24 = ssub.s32 1536, 1536
      %25 = vsyncadd [#allocation6], %s24
      %s26 = sshll.u32 [#allocation5], 4
      %s27 = int_to_ptr.vmem [resolvable:$true] %s26
      %32 = dma.hbm_to_vmem [thread:$0]  %s3, 1536, %s27, [#allocation6], 384, 384, 24
    $region17: #{tpu_custom_call.1} parent=1 // pred_fallthru
      _
    // Predicated region
    $region18: #{tpu_custom_call.1} parent=1 // pred_check
      _
    $region19: #{tpu_custom_call.1} parent=1 // pred_check_branch
      %34 = sbr.rel (0) target = $region21
    $region20: #{tpu_custom_call.1} parent=1 // pred_region
      %s36 = ssub.s32 6144, 6144
      %37 = vsyncadd [#allocation9], %s36
      %s38 = sshll.u32 [#allocation8], 4
      %s39 = int_to_ptr.vmem [resolvable:$true] %s38
      %44 = dma.hbm_to_vmem [thread:$0]  %s4, 6144, %s39, [#allocation9], 384, 384, 24
    $region21: #{tpu_custom_call.1} parent=1 // pred_fallthru
      _
    // Predicated region
    $region22: #{tpu_custom_call.1} parent=1 // pred_check
      _
    $region23: #{tpu_custom_call.1} parent=1 // pred_check_branch
      %46 = sbr.rel (0) target = $region25
    $region24: #{tpu_custom_call.1} parent=1 // pred_region
      _
    $region25: #{tpu_custom_call.1} parent=1 // pred_fallthru
      _
    // Predicated region
    $region26: #{tpu_custom_call.1} parent=1 // pred_check
      _
    $region27: #{tpu_custom_call.1} parent=1 // pred_check_branch
      %48 = sbr.rel (0) target = $region29
    $region28: #{tpu_custom_call.1} parent=1 // pred_region
      _
    $region29: #{tpu_custom_call.1} parent=1 // pred_fallthru
      _
    // Predicated region
    $region30: #{tpu_custom_call.1} parent=1 // pred_check
      _
    $region31: #{tpu_custom_call.1} parent=1 // pred_check_branch
      %50 = sbr.rel (0) target = $region33
    $region32: #{tpu_custom_call.1} parent=1 // pred_region
      %51 = dma.done [#allocation6], 1536
    $region33: #{tpu_custom_call.1} parent=1 // pred_fallthru
      _
    // Predicated region
    $region34: #{tpu_custom_call.1} parent=1 // pred_check
      _
    $region35: #{tpu_custom_call.1} parent=1 // pred_check_branch
      %53 = sbr.rel (0) target = $region37
    $region36: #{tpu_custom_call.1} parent=1 // pred_region
      %54 = dma.done [#allocation9], 6144
    $region37: #{tpu_custom_call.1} parent=1 // pred_fallthru
      _
    %p55 = scmp.eq.s32.totalorder 0, 0
    // Predicated region
    $region38: #{tpu_custom_call.1} parent=1 // pred_check
      %p56 = pneg %p55
    $region39: #{tpu_custom_call.1} parent=1 // pred_check_branch
      %58 = sbr.rel (%p56) target = $region41
    $region40: #{tpu_custom_call.1} parent=1 // pred_region
      %v59 = vld [vmem:[%s2] sm:$0x3]
      %60 = vst [vmem:[#allocation4] sm:$0x3] %v59
    $region41: #{tpu_custom_call.1} parent=1 // pred_fallthru
      _
    %v61 = vld [vmem:[%s0] sm:$0xff]
    %v62 = vld [vmem:[%s0 + $0x8] sm:$0xff]
    %v63 = vld [vmem:[%s1] sm:$0xff]
    %v64 = vld [vmem:[%s1 + $0x8] sm:$0xff]
    %66 = vset.pattern.permute.xlu0 0
    %67 = vperm.xlu0 %66, %v63
    %v68 = vpop.permute.xlu0 %67
    %71 = vset.pattern.permute.xlu0 0
    %72 = vperm.xlu0 %71, %v64
    %v73 = vpop.permute.xlu0 %72
    %v75 = vmul.f32 %v61, %v68
    %v76 = vmul.f32 %v62, %v73
    %v77 = vcombine.high %v75, 0.0
    %v79 = vunpack.c.l.s4 1983009808
    %v80 = vunpack.c.0.s8 %v79
    %v81 = vlaneseq
    %v82 = vshrl.u32 %v81, 7
    %v83 = vsub.s32 %v80, %v82
    %v84 = vrot.slane %v75, %v83
    %v86 = vunpack.c.l.s4 1983009808
    %v87 = vunpack.c.0.s8 %v86
    %v88 = vlaneseq
    %v89 = vshrl.u32 %v88, 7
    %v90 = vsub.s32 %v87, %v89
    %v91 = vrot.slane %v77, %v90
    %v92 = vcombine.high %v76, 0.0
    %v94 = vunpack.c.l.s4 1983009808
    %v95 = vunpack.c.0.s8 %v94
    %v96 = vlaneseq
    %v97 = vshrl.u32 %v96, 7
    %v98 = vsub.s32 %v95, %v97
    %v99 = vrot.slane %v76, %v98
    %v101 = vunpack.c.l.s4 1983009808
    %v102 = vunpack.c.0.s8 %v101
    %v103 = vlaneseq
    %v104 = vshrl.u32 %v103, 7
    %v105 = vsub.s32 %v102, %v104
    %v106 = vrot.slane %v92, %v105
    %v107 = vcombine.low %v84, %v99
    %v108 = vcombine.high %v84, %v99
    %v110 = vunpack.c.l.s4 1934713408
    %v111 = vunpack.c.0.s8 %v110
    %v112 = vlaneseq
    %v113 = vshrl.u32 %v112, 7
    %v114 = vsub.s32 %v111, %v113
    %v115 = vrot.slane %v107, %v114
    %v117 = vunpack.c.l.s4 1934713408
    %v118 = vunpack.c.0.s8 %v117
    %v119 = vlaneseq
    %v120 = vshrl.u32 %v119, 7
    %v121 = vsub.s32 %v118, %v120
    %v122 = vrot.slane %v108, %v121
    %v123 = vcombine.low %v91, %v106
    %v124 = vcombine.high %v91, %v106
    %v126 = vunpack.c.l.s4 1934713408
    %v127 = vunpack.c.0.s8 %v126
    %v128 = vlaneseq
    %v129 = vshrl.u32 %v128, 7
    %v130 = vsub.s32 %v127, %v129
    %v131 = vrot.slane %v123, %v130
    %v133 = vunpack.c.l.s4 1934713408
    %v134 = vunpack.c.0.s8 %v133
    %v135 = vlaneseq
    %v136 = vshrl.u32 %v135, 7
    %v137 = vsub.s32 %v134, %v136
    %v138 = vrot.slane %v124, %v137
    %v139 = vcombine.high %v115, 0.0
    %v140 = vcombine.high %v122, 0.0
    %v141 = vcombine.high %v131, 0.0
    %v142 = vcombine.high %v138, 0.0
    %v143 = vld [vmem:[#allocation5] sm:$0xff]
    %v144 = vld [vmem:[#allocation5 + $0x8] sm:$0xff]
    %v145 = vld [vmem:[#allocation5 + $0x10] sm:$0xff]
    %v146 = vld [vmem:[#allocation5 + $0x18] sm:$0xff]
    %v147 = vld [vmem:[#allocation5 + $0x20] sm:$0xff]
    %v148 = vld [vmem:[#allocation5 + $0x28] sm:$0xff]
    %v149 = vld [vmem:[#allocation5 + $0x30] sm:$0xff]
    %v150 = vld [vmem:[#allocation5 + $0x38] sm:$0xff]
    %v151 = vld [vmem:[#allocation5 + $0x40] sm:$0xff]
    %v152 = vld [vmem:[#allocation5 + $0x48] sm:$0xff]
    %v153 = vld [vmem:[#allocation5 + $0x50] sm:$0xff]
    %v154 = vld [vmem:[#allocation5 + $0x58] sm:$0xff]
    %v155 = vld [vmem:[%s5] sm:$0x7]
    %v157 = vlaneseq
    %v158 = vshrl.u32 %v157, 7
    %v159 = vsub.s32 0, %v158
    %v160 = vrot.slane %v155, %v159
    %v161 = vlaneseq
    %v162 = vshrl.u32 %v161, 7
    %v163 = vsub.s32 1, %v162
    %v164 = vrot.slane %v155, %v163
    %v165 = vlaneseq
    %v166 = vshrl.u32 %v165, 7
    %v167 = vsub.s32 2, %v166
    %v168 = vrot.slane %v155, %v167
    %v180 = vcombine.low %v115, %v139
    %v181 = vcombine.low %v122, %v140
    %v183 = vunpack.c.l.s4 1983009808
    %v184 = vunpack.c.0.s8 %v183
    %v185 = vlaneseq
    %v186 = vshrl.u32 %v185, 7
    %v187 = vsub.s32 %v184, %v186
    %v188 = vrot.slane %v180, %v187
    %v190 = vunpack.c.l.s4 1983009808
    %v191 = vunpack.c.0.s8 %v190
    %v192 = vlaneseq
    %v193 = vshrl.u32 %v192, 7
    %v194 = vsub.s32 %v191, %v193
    %v195 = vrot.slane %v181, %v194
    %v196 = vcombine.low %v188, %v195
    %v197 = vcombine.low %v131, %v141
    %v198 = vcombine.low %v138, %v142
    %v200 = vunpack.c.l.s4 1983009808
    %v201 = vunpack.c.0.s8 %v200
    %v202 = vlaneseq
    %v203 = vshrl.u32 %v202, 7
    %v204 = vsub.s32 %v201, %v203
    %v205 = vrot.slane %v197, %v204
    %v207 = vunpack.c.l.s4 1983009808
    %v208 = vunpack.c.0.s8 %v207
    %v209 = vlaneseq
    %v210 = vshrl.u32 %v209, 7
    %v211 = vsub.s32 %v208, %v210
    %v212 = vrot.slane %v198, %v211
    %v213 = vcombine.low %v205, %v212
    %vm214 = vcmask 261120
    %v215 = vsel %vm214, %v196, 0
    %v217 = vsel %vm214, %v213, 0
    %219 = vmatprep.subr.mxu0 %v144
    %220 = vmatpush1.msra.mxu0 %v143
    %221 = vmatprep.subr.mxu0 %v147
    %222 = vmatpush1.msra.mxu0 %v146
    %223 = vmatprep.subr.mxu0 %v150
    %224 = vmatpush1.msra.mxu0 %v149
    %225 = vmatprep.subr.mxu0 %v153
    %226 = vmatpush1.msra.mxu0 %v152
    %227 = vmatprep.subr.mxu0 0.0
    %228 = vmatpush1.msra.mxu0 0.0
    %229 = vmatprep.subr.mxu0 0.0
    %230 = vmatpush1.msra.mxu0 0.0
    %231 = vmatprep.subr.mxu0 0.0
    %232 = vmatpush1.msra.mxu0 0.0
    %233 = vmatprep.subr.mxu0 0.0
    %234 = vmatpush1.msra.mxu0 0.0
    %235 = vmatprep.subr.mxu0 0.0
    %236 = vmatpush1.msra.mxu0 0.0
    %237 = vmatprep.subr.mxu0 0.0
    %238 = vmatpush1.msra.mxu0 0.0
    %239 = vmatprep.subr.mxu0 0.0
    %240 = vmatpush1.msra.mxu0 0.0
    %241 = vmatprep.subr.mxu0 0.0
    %242 = vmatpush1.msra.mxu0 0.0
    %243 = vmatprep.subr.mxu0 0.0
    %244 = vmatpush1.msra.mxu0 0.0
    %245 = vmatprep.subr.mxu0 0.0
    %246 = vmatpush1.msra.mxu0 0.0
    %247 = vmatprep.subr.mxu0 0.0
    %248 = vmatpush1.msra.mxu0 0.0
    %249 = vmatprep.subr.mxu0 0.0
    %250 = vmatpush1.msra.mxu0 0.0
    %251 = vmatprep.subr.mxu0 0.0
    %252 = vmatpush1.msra.mxu0 0.0
    %253 = vmatprep.subr.mxu0 0.0
    %254 = vmatpush1.msra.mxu0 0.0
    %255 = vmatprep.subr.mxu0 0.0
    %256 = vmatpush1.msra.mxu0 0.0
    %257 = vmatprep.subr.mxu0 0.0
    %258 = vmatpush1.msra.mxu0 0.0
    %259 = vmatprep.subr.mxu0 0.0
    %260 = vmatpush1.msra.mxu0 0.0
    %261 = vmatprep.subr.mxu0 0.0
    %262 = vmatpush1.msra.mxu0 0.0
    %263 = vmatprep.subr.mxu0 0.0
    %264 = vmatpush1.msra.mxu0 0.0
    %265 = vmatprep.subr.mxu0 0.0
    %266 = vmatpush1.msra.mxu0 0.0
    %267 = vmatprep.subr.mxu0 0.0
    %268 = vmatpush1.msra.mxu0 0.0
    %269 = vmatprep.subr.mxu0 0.0
    %270 = vmatpush1.msra.mxu0 0.0
    %271 = vmatprep.subr.mxu0 0.0
    %272 = vmatpush1.msra.mxu0 0.0
    %273 = vmatprep.subr.mxu0 0.0
    %274 = vmatpush1.msra.mxu0 0.0
    %275 = vmatprep.subr.mxu0 0.0
    %276 = vmatpush1.msra.mxu0 0.0
    %277 = vmatprep.subr.mxu0 0.0
    %278 = vmatpush1.msra.mxu0 0.0
    %279 = vmatprep.subr.mxu0 0.0
    %280 = vmatpush1.msra.mxu0 0.0
    %281 = vmatprep.subr.mxu0 0.0
    %282 = vmatpush1.msra.mxu0 0.0
    %283 = vmatprep.mubr.f32.mxu0 0.0
    %284 = vmatmul.mubr.f32.gmra.mrb[0].mxu0 %v215
    %v285 = vpop.f32.mrb[0].mxu0
    %v286 = vadd.f32 %v160, %v285
    %v287 = vpop.f32.mrb[0].mxu0
    %v288 = vadd.f32 %v164, %v287
    %289 = vmatprep.mubr.f32.mxu0 0.0
    %290 = vmatmul.mubr.f32.gmra.mrb[0].mxu0 %v217
    %v291 = vpop.f32.mrb[0].mxu0
    %v292 = vadd.f32 %v160, %v291
    %v293 = vpop.f32.mrb[0].mxu0
    %v294 = vadd.f32 %v164, %v293
    %295 = vdwg.mxu0
    %296 = vmatprep.subr.mxu0 0.0
    %297 = vmatpush1.msra.mxu0 %v145
    %298 = vmatprep.subr.mxu0 0.0
    %299 = vmatpush1.msra.mxu0 %v148
    %300 = vmatprep.subr.mxu0 0.0
    %301 = vmatpush1.msra.mxu0 %v151
    %302 = vmatprep.subr.mxu0 0.0
    %303 = vmatpush1.msra.mxu0 %v154
    %304 = vmatprep.subr.mxu0 0.0
    %305 = vmatpush1.msra.mxu0 0.0
    %306 = vmatprep.subr.mxu0 0.0
    %307 = vmatpush1.msra.mxu0 0.0
    %308 = vmatprep.subr.mxu0 0.0
    %309 = vmatpush1.msra.mxu0 0.0
    %310 = vmatprep.subr.mxu0 0.0
    %311 = vmatpush1.msra.mxu0 0.0
    %312 = vmatprep.subr.mxu0 0.0
    %313 = vmatpush1.msra.mxu0 0.0
    %314 = vmatprep.subr.mxu0 0.0
    %315 = vmatpush1.msra.mxu0 0.0
    %316 = vmatprep.subr.mxu0 0.0
    %317 = vmatpush1.msra.mxu0 0.0
    %318 = vmatprep.subr.mxu0 0.0
    %319 = vmatpush1.msra.mxu0 0.0
    %320 = vmatprep.subr.mxu0 0.0
    %321 = vmatpush1.msra.mxu0 0.0
    %322 = vmatprep.subr.mxu0 0.0
    %323 = vmatpush1.msra.mxu0 0.0
    %324 = vmatprep.subr.mxu0 0.0
    %325 = vmatpush1.msra.mxu0 0.0
    %326 = vmatprep.subr.mxu0 0.0
    %327 = vmatpush1.msra.mxu0 0.0
    %328 = vmatprep.subr.mxu0 0.0
    %329 = vmatpush1.msra.mxu0 0.0
    %330 = vmatprep.subr.mxu0 0.0
    %331 = vmatpush1.msra.mxu0 0.0
    %332 = vmatprep.subr.mxu0 0.0
    %333 = vmatpush1.msra.mxu0 0.0
    %334 = vmatprep.subr.mxu0 0.0
    %335 = vmatpush1.msra.mxu0 0.0
    %336 = vmatprep.subr.mxu0 0.0
    %337 = vmatpush1.msra.mxu0 0.0
    %338 = vmatprep.subr.mxu0 0.0
    %339 = vmatpush1.msra.mxu0 0.0
    %340 = vmatprep.subr.mxu0 0.0
    %341 = vmatpush1.msra.mxu0 0.0
    %342 = vmatprep.subr.mxu0 0.0
    %343 = vmatpush1.msra.mxu0 0.0
    %344 = vmatprep.subr.mxu0 0.0
    %345 = vmatpush1.msra.mxu0 0.0
    %346 = vmatprep.subr.mxu0 0.0
    %347 = vmatpush1.msra.mxu0 0.0
    %348 = vmatprep.subr.mxu0 0.0
    %349 = vmatpush1.msra.mxu0 0.0
    %350 = vmatprep.subr.mxu0 0.0
    %351 = vmatpush1.msra.mxu0 0.0
    %352 = vmatprep.subr.mxu0 0.0
    %353 = vmatpush1.msra.mxu0 0.0
    %354 = vmatprep.subr.mxu0 0.0
    %355 = vmatpush1.msra.mxu0 0.0
    %356 = vmatprep.subr.mxu0 0.0
    %357 = vmatpush1.msra.mxu0 0.0
    %358 = vmatprep.subr.mxu0 0.0
    %359 = vmatpush1.msra.mxu0 0.0
    %360 = vmatprep.mubr.f32.mxu0 0.0
    %361 = vmatmul.mubr.f32.gmra.mrb[0].mxu0 %v215
    %v362 = vpop.f32.mrb[0].mxu0
    %v363 = vadd.f32 %v168, %v362
    %v364 = vpop.f32.mrb[0].mxu0
    %365 = vmatprep.mubr.f32.mxu0 0.0
    %366 = vmatmul.mubr.f32.gmra.mrb[0].mxu0 %v217
    %v367 = vpop.f32.mrb[0].mxu0
    %v368 = vadd.f32 %v168, %v367
    %v369 = vpop.f32.mrb[0].mxu0
    %370 = vdwg.mxu0
    %v377 = vcombine.low %v286, %v288
    %v378 = vcombine.high %v286, %v288
    %v379 = vcombine.high %v363, %v363
    %v381 = vunpack.c.l.s4 1983009808
    %v382 = vunpack.c.0.s8 %v381
    %v383 = vlaneseq
    %v384 = vshrl.u32 %v383, 7
    %v385 = vsub.s32 %v382, %v384
    %v386 = vrot.slane %v377, %v385
    %v388 = vunpack.c.l.s4 1983009808
    %v389 = vunpack.c.0.s8 %v388
    %v390 = vlaneseq
    %v391 = vshrl.u32 %v390, 7
    %v392 = vsub.s32 %v389, %v391
    %v393 = vrot.slane %v378, %v392
    %v395 = vunpack.c.l.s4 1983009808
    %v396 = vunpack.c.0.s8 %v395
    %v397 = vlaneseq
    %v398 = vshrl.u32 %v397, 7
    %v399 = vsub.s32 %v396, %v398
    %v400 = vrot.slane %v363, %v399
    %v402 = vunpack.c.l.s4 1983009808
    %v403 = vunpack.c.0.s8 %v402
    %v404 = vlaneseq
    %v405 = vshrl.u32 %v404, 7
    %v406 = vsub.s32 %v403, %v405
    %v407 = vrot.slane %v379, %v406
    %v408 = vcombine.low %v386, %v400
    %v409 = vcombine.high %v386, %v400
    %v410 = vcombine.low %v393, %v407
    %v411 = vcombine.high %v393, %v407
    %v412 = vcombine.low %v292, %v294
    %v413 = vcombine.high %v292, %v294
    %v414 = vcombine.high %v368, %v368
    %v416 = vunpack.c.l.s4 1983009808
    %v417 = vunpack.c.0.s8 %v416
    %v418 = vlaneseq
    %v419 = vshrl.u32 %v418, 7
    %v420 = vsub.s32 %v417, %v419
    %v421 = vrot.slane %v412, %v420
    %v423 = vunpack.c.l.s4 1983009808
    %v424 = vunpack.c.0.s8 %v423
    %v425 = vlaneseq
    %v426 = vshrl.u32 %v425, 7
    %v427 = vsub.s32 %v424, %v426
    %v428 = vrot.slane %v413, %v427
    %v430 = vunpack.c.l.s4 1983009808
    %v431 = vunpack.c.0.s8 %v430
    %v432 = vlaneseq
    %v433 = vshrl.u32 %v432, 7
    %v434 = vsub.s32 %v431, %v433
    %v435 = vrot.slane %v368, %v434
    %v437 = vunpack.c.l.s4 1983009808
    %v438 = vunpack.c.0.s8 %v437
    %v439 = vlaneseq
    %v440 = vshrl.u32 %v439, 7
    %v441 = vsub.s32 %v438, %v440
    %v442 = vrot.slane %v414, %v441
    %v443 = vcombine.low %v421, %v435
    %v444 = vcombine.high %v421, %v435
    %v445 = vcombine.low %v428, %v442
    %v446 = vcombine.high %v428, %v442
    %455 = vst [vmem:[#allocation2] sm:$0x3f] %v408
    %456 = vst [vmem:[#allocation2 + $0x6] sm:$0x3f] %v409
    %457 = vst [vmem:[#allocation2 + $0xc] sm:$0x3f] %v410
    %458 = vst [vmem:[#allocation2 + $0x12] sm:$0x3f] %v411
    %459 = vst [vmem:[#allocation2 + $0x18] sm:$0x3f] %v443
    %460 = vst [vmem:[#allocation2 + $0x1e] sm:$0x3f] %v444
    %461 = vst [vmem:[#allocation2 + $0x24] sm:$0x3f] %v445
    %462 = vst [vmem:[#allocation2 + $0x2a] sm:$0x3f] %v446
    %v463 = vld [vmem:[#allocation8] sm:$0xff]
    %v464 = vld [vmem:[#allocation8 + $0x8] sm:$0xff]
    %v465 = vld [vmem:[#allocation8 + $0x10] sm:$0xff]
    %v466 = vld [vmem:[#allocation8 + $0x18] sm:$0xff]
    %v467 = vld [vmem:[#allocation8 + $0x20] sm:$0xff]
    %v468 = vld [vmem:[#allocation8 + $0x28] sm:$0xff]
    %v469 = vld [vmem:[#allocation8 + $0x30] sm:$0xff]
    %v470 = vld [vmem:[#allocation8 + $0x38] sm:$0xff]
    %v471 = vld [vmem:[#allocation8 + $0x40] sm:$0xff]
    %v472 = vld [vmem:[#allocation8 + $0x48] sm:$0xff]
    %v473 = vld [vmem:[#allocation8 + $0x50] sm:$0xff]
    %v474 = vld [vmem:[#allocation8 + $0x58] sm:$0xff]
    %v475 = vld [vmem:[#allocation8 + $0x60] sm:$0xff]
    %v476 = vld [vmem:[#allocation8 + $0x68] sm:$0xff]
    %v477 = vld [vmem:[#allocation8 + $0x70] sm:$0xff]
    %v478 = vld [vmem:[#allocation8 + $0x78] sm:$0xff]
    %v479 = vld [vmem:[#allocation8 + $0x80] sm:$0xff]
    %v480 = vld [vmem:[#allocation8 + $0x88] sm:$0xff]
    %v481 = vld [vmem:[#allocation8 + $0x90] sm:$0xff]
    %v482 = vld [vmem:[#allocation8 + $0x98] sm:$0xff]
    %v483 = vld [vmem:[#allocation8 + $0xa0] sm:$0xff]
    %v484 = vld [vmem:[#allocation8 + $0xa8] sm:$0xff]
    %v485 = vld [vmem:[#allocation8 + $0xb0] sm:$0xff]
    %v486 = vld [vmem:[#allocation8 + $0xb8] sm:$0xff]
    %v487 = vld [vmem:[#allocation8 + $0xc0] sm:$0xff]
    %v488 = vld [vmem:[#allocation8 + $0xc8] sm:$0xff]
    %v489 = vld [vmem:[#allocation8 + $0xd0] sm:$0xff]
    %v490 = vld [vmem:[#allocation8 + $0xd8] sm:$0xff]
    %v491 = vld [vmem:[#allocation8 + $0xe0] sm:$0xff]
    %v492 = vld [vmem:[#allocation8 + $0xe8] sm:$0xff]
    %v493 = vld [vmem:[#allocation8 + $0xf0] sm:$0xff]
    %v494 = vld [vmem:[#allocation8 + $0xf8] sm:$0xff]
    %v495 = vld [vmem:[#allocation8 + $0x100] sm:$0xff]
    %v496 = vld [vmem:[#allocation8 + $0x108] sm:$0xff]
    %v497 = vld [vmem:[#allocation8 + $0x110] sm:$0xff]
    %v498 = vld [vmem:[#allocation8 + $0x118] sm:$0xff]
    %v499 = vld [vmem:[#allocation8 + $0x120] sm:$0xff]
    %v500 = vld [vmem:[#allocation8 + $0x128] sm:$0xff]
    %v501 = vld [vmem:[#allocation8 + $0x130] sm:$0xff]
    %v502 = vld [vmem:[#allocation8 + $0x138] sm:$0xff]
    %v503 = vld [vmem:[#allocation8 + $0x140] sm:$0xff]
    %v504 = vld [vmem:[#allocation8 + $0x148] sm:$0xff]
    %v505 = vld [vmem:[#allocation8 + $0x150] sm:$0xff]
    %v506 = vld [vmem:[#allocation8 + $0x158] sm:$0xff]
    %v507 = vld [vmem:[#allocation8 + $0x160] sm:$0xff]
    %v508 = vld [vmem:[#allocation8 + $0x168] sm:$0xff]
    %v509 = vld [vmem:[#allocation8 + $0x170] sm:$0xff]
    %v510 = vld [vmem:[#allocation8 + $0x178] sm:$0xff]
    %v511 = vld [vmem:[%s6] sm:$0x1]
    %v513 = vlaneseq
    %v514 = vshrl.u32 %v513, 7
    %v515 = vsub.s32 0, %v514
    %v516 = vrot.slane %v511, %v515
    %v518 = vld [vmem:[#allocation4] sm:$0x3]
    %v519 = vld [vmem:[#allocation2] sm:$0x3f]
    %520 = vmatprep.subr.mxu0 %v464
    %521 = vmatpush1.msra.mxu0 %v463
    %522 = vmatprep.subr.mxu0 %v467
    %523 = vmatpush1.msra.mxu0 %v466
    %524 = vmatprep.subr.mxu0 %v470
    %525 = vmatpush1.msra.mxu0 %v469
    %526 = vmatprep.subr.mxu0 %v473
    %527 = vmatpush1.msra.mxu0 %v472
    %528 = vmatprep.subr.mxu0 %v476
    %529 = vmatpush1.msra.mxu0 %v475
    %530 = vmatprep.subr.mxu0 %v479
    %531 = vmatpush1.msra.mxu0 %v478
    %532 = vmatprep.subr.mxu0 %v482
    %533 = vmatpush1.msra.mxu0 %v481
    %534 = vmatprep.subr.mxu0 %v485
    %535 = vmatpush1.msra.mxu0 %v484
    %536 = vmatprep.subr.mxu0 %v488
    %537 = vmatpush1.msra.mxu0 %v487
    %538 = vmatprep.subr.mxu0 %v491
    %539 = vmatpush1.msra.mxu0 %v490
    %540 = vmatprep.subr.mxu0 %v494
    %541 = vmatpush1.msra.mxu0 %v493
    %542 = vmatprep.subr.mxu0 %v497
    %543 = vmatpush1.msra.mxu0 %v496
    %544 = vmatprep.subr.mxu0 %v500
    %545 = vmatpush1.msra.mxu0 %v499
    %546 = vmatprep.subr.mxu0 %v503
    %547 = vmatpush1.msra.mxu0 %v502
    %548 = vmatprep.subr.mxu0 %v506
    %549 = vmatpush1.msra.mxu0 %v505
    %550 = vmatprep.subr.mxu0 %v509
    %551 = vmatpush1.msra.mxu0 %v508
    %552 = vmatprep.subr.mxu0 0.0
    %553 = vmatpush1.msra.mxu0 0.0
    %554 = vmatprep.subr.mxu0 0.0
    %555 = vmatpush1.msra.mxu0 0.0
    %556 = vmatprep.subr.mxu0 0.0
    %557 = vmatpush1.msra.mxu0 0.0
    %558 = vmatprep.subr.mxu0 0.0
    %559 = vmatpush1.msra.mxu0 0.0
    %560 = vmatprep.subr.mxu0 0.0
    %561 = vmatpush1.msra.mxu0 0.0
    %562 = vmatprep.subr.mxu0 0.0
    %563 = vmatpush1.msra.mxu0 0.0
    %564 = vmatprep.subr.mxu0 0.0
    %565 = vmatpush1.msra.mxu0 0.0
    %566 = vmatprep.subr.mxu0 0.0
    %567 = vmatpush1.msra.mxu0 0.0
    %568 = vmatprep.subr.mxu0 0.0
    %569 = vmatpush1.msra.mxu0 0.0
    %570 = vmatprep.subr.mxu0 0.0
    %571 = vmatpush1.msra.mxu0 0.0
    %572 = vmatprep.subr.mxu0 0.0
    %573 = vmatpush1.msra.mxu0 0.0
    %574 = vmatprep.subr.mxu0 0.0
    %575 = vmatpush1.msra.mxu0 0.0
    %576 = vmatprep.subr.mxu0 0.0
    %577 = vmatpush1.msra.mxu0 0.0
    %578 = vmatprep.subr.mxu0 0.0
    %579 = vmatpush1.msra.mxu0 0.0
    %580 = vmatprep.subr.mxu0 0.0
    %581 = vmatpush1.msra.mxu0 0.0
    %582 = vmatprep.subr.mxu0 0.0
    %583 = vmatpush1.msra.mxu0 0.0
    %584 = vmatprep.mubr.f32.mxu0 0.0
    %585 = vmatmul.mubr.f32.gmra.mrb[0].mxu0 %v518
    %v586 = vpop.f32.mrb[0].mxu0
    %v587 = vadd.f32 0.0, %v586
    %v588 = vpop.f32.mrb[0].mxu0
    %v589 = vadd.f32 0.0, %v588
    %590 = vdwg.mxu0
    %591 = vmatprep.subr.mxu0 0.0
    %592 = vmatpush1.msra.mxu0 %v465
    %593 = vmatprep.subr.mxu0 0.0
    %594 = vmatpush1.msra.mxu0 %v468
    %595 = vmatprep.subr.mxu0 0.0
    %596 = vmatpush1.msra.mxu0 %v471
    %597 = vmatprep.subr.mxu0 0.0
    %598 = vmatpush1.msra.mxu0 %v474
    %599 = vmatprep.subr.mxu0 0.0
    %600 = vmatpush1.msra.mxu0 %v477
    %601 = vmatprep.subr.mxu0 0.0
    %602 = vmatpush1.msra.mxu0 %v480
    %603 = vmatprep.subr.mxu0 0.0
    %604 = vmatpush1.msra.mxu0 %v483
    %605 = vmatprep.subr.mxu0 0.0
    %606 = vmatpush1.msra.mxu0 %v486
    %607 = vmatprep.subr.mxu0 0.0
    %608 = vmatpush1.msra.mxu0 %v489
    %609 = vmatprep.subr.mxu0 0.0
    %610 = vmatpush1.msra.mxu0 %v492
    %611 = vmatprep.subr.mxu0 0.0
    %612 = vmatpush1.msra.mxu0 %v495
    %613 = vmatprep.subr.mxu0 0.0
    %614 = vmatpush1.msra.mxu0 %v498
    %615 = vmatprep.subr.mxu0 0.0
    %616 = vmatpush1.msra.mxu0 %v501
    %617 = vmatprep.subr.mxu0 0.0
    %618 = vmatpush1.msra.mxu0 %v504
    %619 = vmatprep.subr.mxu0 0.0
    %620 = vmatpush1.msra.mxu0 %v507
    %621 = vmatprep.subr.mxu0 0.0
    %622 = vmatpush1.msra.mxu0 %v510
    %623 = vmatprep.subr.mxu0 0.0
    %624 = vmatpush1.msra.mxu0 0.0
    %625 = vmatprep.subr.mxu0 0.0
    %626 = vmatpush1.msra.mxu0 0.0
    %627 = vmatprep.subr.mxu0 0.0
    %628 = vmatpush1.msra.mxu0 0.0
    %629 = vmatprep.subr.mxu0 0.0
    %630 = vmatpush1.msra.mxu0 0.0
    %631 = vmatprep.subr.mxu0 0.0
    %632 = vmatpush1.msra.mxu0 0.0
    %633 = vmatprep.subr.mxu0 0.0
    %634 = vmatpush1.msra.mxu0 0.0
    %635 = vmatprep.subr.mxu0 0.0
    %636 = vmatpush1.msra.mxu0 0.0
    %637 = vmatprep.subr.mxu0 0.0
    %638 = vmatpush1.msra.mxu0 0.0
    %639 = vmatprep.subr.mxu0 0.0
    %640 = vmatpush1.msra.mxu0 0.0
    %641 = vmatprep.subr.mxu0 0.0
    %642 = vmatpush1.msra.mxu0 0.0
    %643 = vmatprep.subr.mxu0 0.0
    %644 = vmatpush1.msra.mxu0 0.0
    %645 = vmatprep.subr.mxu0 0.0
    %646 = vmatpush1.msra.mxu0 0.0
    %647 = vmatprep.subr.mxu0 0.0
    %648 = vmatpush1.msra.mxu0 0.0
    %649 = vmatprep.subr.mxu0 0.0
    %650 = vmatpush1.msra.mxu0 0.0
    %651 = vmatprep.subr.mxu0 0.0
    %652 = vmatpush1.msra.mxu0 0.0
    %653 = vmatprep.subr.mxu0 0.0
    %654 = vmatpush1.msra.mxu0 0.0
    %655 = vmatprep.mubr.f32.mxu0 0.0
    %656 = vmatmul.mubr.f32.gmra.mrb[0].mxu0 %v518
    %v657 = vpop.f32.mrb[0].mxu0
    %v658 = vadd.f32 0.0, %v657
    %v659 = vpop.f32.mrb[0].mxu0
    %660 = vdwg.mxu0
    %v661 = vadd.f32 %v519, %v587
    %v662 = vxor.u32 %v661, 2147483648
    %v663 = vmul.f32 %v662, 1.442695
    %v664 = vpow.pop %v663
    %v665 = vadd.f32 %v664, 1.0
    %v666 = vrcp.pop %v665
    %v667 = vmul.f32 1.0, %v666
    %v669 = vrot.slane %v519, 2
    %v671 = vadd.f32 %v669, %v589
    %v672 = vxor.u32 %v671, 2147483648
    %v673 = vmul.f32 %v672, 1.442695
    %v674 = vpow.pop %v673
    %v675 = vadd.f32 %v674, 1.0
    %v676 = vrcp.pop %v675
    %v677 = vmul.f32 1.0, %v676
    %v678 = vadd.f32 %v658, %v516
    %v679 = vmul.f32 %v667, %v678
    %v680 = vrot.slane %v519, 4
    %v682 = vadd.f32 %v680, %v679
    %v683 = vtanh.pop %v682
    %v684 = vsub.f32 %v518, %v683
    %v685 = vmul.f32 %v677, %v684
    %v686 = vadd.f32 %v683, %v685
    %687 = vst [vmem:[#allocation3] sm:$0x3] %v686
    %s688 = scalar_lea.vmem [#allocation2], 6
    %v689 = vld [vmem:[%s688] sm:$0x3f]
    %690 = vmatprep.subr.mxu0 %v464
    %691 = vmatpush1.msra.mxu0 %v463
    %692 = vmatprep.subr.mxu0 %v467
    %693 = vmatpush1.msra.mxu0 %v466
    %694 = vmatprep.subr.mxu0 %v470
    %695 = vmatpush1.msra.mxu0 %v469
    %696 = vmatprep.subr.mxu0 %v473
    %697 = vmatpush1.msra.mxu0 %v472
    %698 = vmatprep.subr.mxu0 %v476
    %699 = vmatpush1.msra.mxu0 %v475
    %700 = vmatprep.subr.mxu0 %v479
    %701 = vmatpush1.msra.mxu0 %v478
    %702 = vmatprep.subr.mxu0 %v482
    %703 = vmatpush1.msra.mxu0 %v481
    %704 = vmatprep.subr.mxu0 %v485
    %705 = vmatpush1.msra.mxu0 %v484
    %706 = vmatprep.subr.mxu0 %v488
    %707 = vmatpush1.msra.mxu0 %v487
    %708 = vmatprep.subr.mxu0 %v491
    %709 = vmatpush1.msra.mxu0 %v490
    %710 = vmatprep.subr.mxu0 %v494
    %711 = vmatpush1.msra.mxu0 %v493
    %712 = vmatprep.subr.mxu0 %v497
    %713 = vmatpush1.msra.mxu0 %v496
    %714 = vmatprep.subr.mxu0 %v500
    %715 = vmatpush1.msra.mxu0 %v499
    %716 = vmatprep.subr.mxu0 %v503
    %717 = vmatpush1.msra.mxu0 %v502
    %718 = vmatprep.subr.mxu0 %v506
    %719 = vmatpush1.msra.mxu0 %v505
    %720 = vmatprep.subr.mxu0 %v509
    %721 = vmatpush1.msra.mxu0 %v508
    %722 = vmatprep.subr.mxu0 0.0
    %723 = vmatpush1.msra.mxu0 0.0
    %724 = vmatprep.subr.mxu0 0.0
    %725 = vmatpush1.msra.mxu0 0.0
    %726 = vmatprep.subr.mxu0 0.0
    %727 = vmatpush1.msra.mxu0 0.0
    %728 = vmatprep.subr.mxu0 0.0
    %729 = vmatpush1.msra.mxu0 0.0
    %730 = vmatprep.subr.mxu0 0.0
    %731 = vmatpush1.msra.mxu0 0.0
    %732 = vmatprep.subr.mxu0 0.0
    %733 = vmatpush1.msra.mxu0 0.0
    %734 = vmatprep.subr.mxu0 0.0
    %735 = vmatpush1.msra.mxu0 0.0
    %736 = vmatprep.subr.mxu0 0.0
    %737 = vmatpush1.msra.mxu0 0.0
    %738 = vmatprep.subr.mxu0 0.0
    %739 = vmatpush1.msra.mxu0 0.0
    %740 = vmatprep.subr.mxu0 0.0
    %741 = vmatpush1.msra.mxu0 0.0
    %742 = vmatprep.subr.mxu0 0.0
    %743 = vmatpush1.msra.mxu0 0.0
    %744 = vmatprep.subr.mxu0 0.0
    %745 = vmatpush1.msra.mxu0 0.0
    %746 = vmatprep.subr.mxu0 0.0
    %747 = vmatpush1.msra.mxu0 0.0
    %748 = vmatprep.subr.mxu0 0.0
    %749 = vmatpush1.msra.mxu0 0.0
    %750 = vmatprep.subr.mxu0 0.0
    %751 = vmatpush1.msra.mxu0 0.0
    %752 = vmatprep.subr.mxu0 0.0
    %753 = vmatpush1.msra.mxu0 0.0
    %754 = vmatprep.mubr.f32.mxu0 0.0
    %755 = vmatmul.mubr.f32.gmra.mrb[0].mxu0 %v686
    %v756 = vpop.f32.mrb[0].mxu0
    %v757 = vadd.f32 0.0, %v756
    %v758 = vpop.f32.mrb[0].mxu0
    %v759 = vadd.f32 0.0, %v758
    %760 = vdwg.mxu0
    %761 = vmatprep.subr.mxu0 0.0
    %762 = vmatpush1.msra.mxu0 %v465
    %763 = vmatprep.subr.mxu0 0.0
    %764 = vmatpush1.msra.mxu0 %v468
    %765 = vmatprep.subr.mxu0 0.0
    %766 = vmatpush1.msra.mxu0 %v471
    %767 = vmatprep.subr.mxu0 0.0
    %768 = vmatpush1.msra.mxu0 %v474
    %769 = vmatprep.subr.mxu0 0.0
    %770 = vmatpush1.msra.mxu0 %v477
    %771 = vmatprep.subr.mxu0 0.0
    %772 = vmatpush1.msra.mxu0 %v480
    %773 = vmatprep.subr.mxu0 0.0
    %774 = vmatpush1.msra.mxu0 %v483
    %775 = vmatprep.subr.mxu0 0.0
    %776 = vmatpush1.msra.mxu0 %v486
    %777 = vmatprep.subr.mxu0 0.0
    %778 = vmatpush1.msra.mxu0 %v489
    %779 = vmatprep.subr.mxu0 0.0
    %780 = vmatpush1.msra.mxu0 %v492
    %781 = vmatprep.subr.mxu0 0.0
    %782 = vmatpush1.msra.mxu0 %v495
    %783 = vmatprep.subr.mxu0 0.0
    %784 = vmatpush1.msra.mxu0 %v498
    %785 = vmatprep.subr.mxu0 0.0
    %786 = vmatpush1.msra.mxu0 %v501
    %787 = vmatprep.subr.mxu0 0.0
    %788 = vmatpush1.msra.mxu0 %v504
    %789 = vmatprep.subr.mxu0 0.0
    %790 = vmatpush1.msra.mxu0 %v507
    %791 = vmatprep.subr.mxu0 0.0
    %792 = vmatpush1.msra.mxu0 %v510
    %793 = vmatprep.subr.mxu0 0.0
    %794 = vmatpush1.msra.mxu0 0.0
    %795 = vmatprep.subr.mxu0 0.0
    %796 = vmatpush1.msra.mxu0 0.0
    %797 = vmatprep.subr.mxu0 0.0
    %798 = vmatpush1.msra.mxu0 0.0
    %799 = vmatprep.subr.mxu0 0.0
    %800 = vmatpush1.msra.mxu0 0.0
    %801 = vmatprep.subr.mxu0 0.0
    %802 = vmatpush1.msra.mxu0 0.0
    %803 = vmatprep.subr.mxu0 0.0
    %804 = vmatpush1.msra.mxu0 0.0
    %805 = vmatprep.subr.mxu0 0.0
    %806 = vmatpush1.msra.mxu0 0.0
    %807 = vmatprep.subr.mxu0 0.0
    %808 = vmatpush1.msra.mxu0 0.0
    %809 = vmatprep.subr.mxu0 0.0
    %810 = vmatpush1.msra.mxu0 0.0
    %811 = vmatprep.subr.mxu0 0.0
    %812 = vmatpush1.msra.mxu0 0.0
    %813 = vmatprep.subr.mxu0 0.0
    %814 = vmatpush1.msra.mxu0 0.0
    %815 = vmatprep.subr.mxu0 0.0
    %816 = vmatpush1.msra.mxu0 0.0
    %817 = vmatprep.subr.mxu0 0.0
    %818 = vmatpush1.msra.mxu0 0.0
    %819 = vmatprep.subr.mxu0 0.0
    %820 = vmatpush1.msra.mxu0 0.0
    %821 = vmatprep.subr.mxu0 0.0
    %822 = vmatpush1.msra.mxu0 0.0
    %823 = vmatprep.subr.mxu0 0.0
    %824 = vmatpush1.msra.mxu0 0.0
    %825 = vmatprep.mubr.f32.mxu0 0.0
    %826 = vmatmul.mubr.f32.gmra.mrb[0].mxu0 %v686
    %v827 = vpop.f32.mrb[0].mxu0
    %v828 = vadd.f32 0.0, %v827
    %v829 = vpop.f32.mrb[0].mxu0
    %830 = vdwg.mxu0
    %v831 = vadd.f32 %v689, %v757
    %v832 = vxor.u32 %v831, 2147483648
    %v833 = vmul.f32 %v832, 1.442695
    %v834 = vpow.pop %v833
    %v835 = vadd.f32 %v834, 1.0
    %v836 = vrcp.pop %v835
    %v837 = vmul.f32 1.0, %v836
    %v839 = vrot.slane %v689, 2
    %v841 = vadd.f32 %v839, %v759
    %v842 = vxor.u32 %v841, 2147483648
    %v843 = vmul.f32 %v842, 1.442695
    %v844 = vpow.pop %v843
    %v845 = vadd.f32 %v844, 1.0
    %v846 = vrcp.pop %v845
    %v847 = vmul.f32 1.0, %v846
    %v848 = vadd.f32 %v828, %v516
    %v849 = vmul.f32 %v837, %v848
    %v850 = vrot.slane %v689, 4
    %v852 = vadd.f32 %v850, %v849
    %v853 = vtanh.pop %v852
    %v854 = vsub.f32 %v686, %v853
    %v855 = vmul.f32 %v847, %v854
    %v856 = vadd.f32 %v853, %v855
    %s857 = scalar_lea.vmem [#allocation3], 2
    %858 = vst [vmem:[%s857] sm:$0x3] %v856
    %s859 = scalar_lea.vmem [#allocation2], 12
    %v860 = vld [vmem:[%s859] sm:$0x3f]
    %861 = vmatprep.subr.mxu0 %v464
    %862 = vmatpush1.msra.mxu0 %v463
    %863 = vmatprep.subr.mxu0 %v467
    %864 = vmatpush1.msra.mxu0 %v466
    %865 = vmatprep.subr.mxu0 %v470
    %866 = vmatpush1.msra.mxu0 %v469
    %867 = vmatprep.subr.mxu0 %v473
    %868 = vmatpush1.msra.mxu0 %v472
    %869 = vmatprep.subr.mxu0 %v476
    %870 = vmatpush1.msra.mxu0 %v475
    %871 = vmatprep.subr.mxu0 %v479
    %872 = vmatpush1.msra.mxu0 %v478
    %873 = vmatprep.subr.mxu0 %v482
    %874 = vmatpush1.msra.mxu0 %v481
    %875 = vmatprep.subr.mxu0 %v485
    %876 = vmatpush1.msra.mxu0 %v484
    %877 = vmatprep.subr.mxu0 %v488
    %878 = vmatpush1.msra.mxu0 %v487
    %879 = vmatprep.subr.mxu0 %v491
    %880 = vmatpush1.msra.mxu0 %v490
    %881 = vmatprep.subr.mxu0 %v494
    %882 = vmatpush1.msra.mxu0 %v493
    %883 = vmatprep.subr.mxu0 %v497
    %884 = vmatpush1.msra.mxu0 %v496
    %885 = vmatprep.subr.mxu0 %v500
    %886 = vmatpush1.msra.mxu0 %v499
    %887 = vmatprep.subr.mxu0 %v503
    %888 = vmatpush1.msra.mxu0 %v502
    %889 = vmatprep.subr.mxu0 %v506
    %890 = vmatpush1.msra.mxu0 %v505
    %891 = vmatprep.subr.mxu0 %v509
    %892 = vmatpush1.msra.mxu0 %v508
    %893 = vmatprep.subr.mxu0 0.0
    %894 = vmatpush1.msra.mxu0 0.0
    %895 = vmatprep.subr.mxu0 0.0
    %896 = vmatpush1.msra.mxu0 0.0
    %897 = vmatprep.subr.mxu0 0.0
    %898 = vmatpush1.msra.mxu0 0.0
    %899 = vmatprep.subr.mxu0 0.0
    %900 = vmatpush1.msra.mxu0 0.0
    %901 = vmatprep.subr.mxu0 0.0
    %902 = vmatpush1.msra.mxu0 0.0
    %903 = vmatprep.subr.mxu0 0.0
    %904 = vmatpush1.msra.mxu0 0.0
    %905 = vmatprep.subr.mxu0 0.0
    %906 = vmatpush1.msra.mxu0 0.0
    %907 = vmatprep.subr.mxu0 0.0
    %908 = vmatpush1.msra.mxu0 0.0
    %909 = vmatprep.subr.mxu0 0.0
    %910 = vmatpush1.msra.mxu0 0.0
    %911 = vmatprep.subr.mxu0 0.0
    %912 = vmatpush1.msra.mxu0 0.0
    %913 = vmatprep.subr.mxu0 0.0
    %914 = vmatpush1.msra.mxu0 0.0
    %915 = vmatprep.subr.mxu0 0.0
    %916 = vmatpush1.msra.mxu0 0.0
    %917 = vmatprep.subr.mxu0 0.0
    %918 = vmatpush1.msra.mxu0 0.0
    %919 = vmatprep.subr.mxu0 0.0
    %920 = vmatpush1.msra.mxu0 0.0
    %921 = vmatprep.subr.mxu0 0.0
    %922 = vmatpush1.msra.mxu0 0.0
    %923 = vmatprep.subr.mxu0 0.0
    %924 = vmatpush1.msra.mxu0 0.0
    %925 = vmatprep.mubr.f32.mxu0 0.0
    %926 = vmatmul.mubr.f32.gmra.mrb[0].mxu0 %v856
    %v927 = vpop.f32.mrb[0].mxu0
    %v928 = vadd.f32 0.0, %v927
    %v929 = vpop.f32.mrb[0].mxu0
    %v930 = vadd.f32 0.0, %v929
    %931 = vdwg.mxu0
    %932 = vmatprep.subr.mxu0 0.0
    %933 = vmatpush1.msra.mxu0 %v465
    %934 = vmatprep.subr.mxu0 0.0
    %935 = vmatpush1.msra.mxu0 %v468
    %936 = vmatprep.subr.mxu0 0.0
    %937 = vmatpush1.msra.mxu0 %v471
    %938 = vmatprep.subr.mxu0 0.0
    %939 = vmatpush1.msra.mxu0 %v474
    %940 = vmatprep.subr.mxu0 0.0
    %941 = vmatpush1.msra.mxu0 %v477
    %942 = vmatprep.subr.mxu0 0.0
    %943 = vmatpush1.msra.mxu0 %v480
    %944 = vmatprep.subr.mxu0 0.0
    %945 = vmatpush1.msra.mxu0 %v483
    %946 = vmatprep.subr.mxu0 0.0
    %947 = vmatpush1.msra.mxu0 %v486
    %948 = vmatprep.subr.mxu0 0.0
    %949 = vmatpush1.msra.mxu0 %v489
    %950 = vmatprep.subr.mxu0 0.0
    %951 = vmatpush1.msra.mxu0 %v492
    %952 = vmatprep.subr.mxu0 0.0
    %953 = vmatpush1.msra.mxu0 %v495
    %954 = vmatprep.subr.mxu0 0.0
    %955 = vmatpush1.msra.mxu0 %v498
    %956 = vmatprep.subr.mxu0 0.0
    %957 = vmatpush1.msra.mxu0 %v501
    %958 = vmatprep.subr.mxu0 0.0
    %959 = vmatpush1.msra.mxu0 %v504
    %960 = vmatprep.subr.mxu0 0.0
    %961 = vmatpush1.msra.mxu0 %v507
    %962 = vmatprep.subr.mxu0 0.0
    %963 = vmatpush1.msra.mxu0 %v510
    %964 = vmatprep.subr.mxu0 0.0
    %965 = vmatpush1.msra.mxu0 0.0
    %966 = vmatprep.subr.mxu0 0.0
    %967 = vmatpush1.msra.mxu0 0.0
    %968 = vmatprep.subr.mxu0 0.0
    %969 = vmatpush1.msra.mxu0 0.0
    %970 = vmatprep.subr.mxu0 0.0
    %971 = vmatpush1.msra.mxu0 0.0
    %972 = vmatprep.subr.mxu0 0.0
    %973 = vmatpush1.msra.mxu0 0.0
    %974 = vmatprep.subr.mxu0 0.0
    %975 = vmatpush1.msra.mxu0 0.0
    %976 = vmatprep.subr.mxu0 0.0
    %977 = vmatpush1.msra.mxu0 0.0
    %978 = vmatprep.subr.mxu0 0.0
    %979 = vmatpush1.msra.mxu0 0.0
    %980 = vmatprep.subr.mxu0 0.0
    %981 = vmatpush1.msra.mxu0 0.0
    %982 = vmatprep.subr.mxu0 0.0
    %983 = vmatpush1.msra.mxu0 0.0
    %984 = vmatprep.subr.mxu0 0.0
    %985 = vmatpush1.msra.mxu0 0.0
    %986 = vmatprep.subr.mxu0 0.0
    %987 = vmatpush1.msra.mxu0 0.0
    %988 = vmatprep.subr.mxu0 0.0
    %989 = vmatpush1.msra.mxu0 0.0
    %990 = vmatprep.subr.mxu0 0.0
    %991 = vmatpush1.msra.mxu0 0.0
    %992 = vmatprep.subr.mxu0 0.0
    %993 = vmatpush1.msra.mxu0 0.0
    %994 = vmatprep.subr.mxu0 0.0
    %995 = vmatpush1.msra.mxu0 0.0
    %996 = vmatprep.mubr.f32.mxu0 0.0
    %997 = vmatmul.mubr.f32.gmra.mrb[0].mxu0 %v856
    %v998 = vpop.f32.mrb[0].mxu0
    %v999 = vadd.f32 0.0, %v998
    %v1000 = vpop.f32.mrb[0].mxu0
    %1001 = vdwg.mxu0
    %v1002 = vadd.f32 %v860, %v928
    %v1003 = vxor.u32 %v1002, 2147483648
    %v1004 = vmul.f32 %v1003, 1.442695
    %v1005 = vpow.pop %v1004
    %v1006 = vadd.f32 %v1005, 1.0
    %v1007 = vrcp.pop %v1006
    %v1008 = vmul.f32 1.0, %v1007
    %v1010 = vrot.slane %v860, 2
    %v1012 = vadd.f32 %v1010, %v930
    %v1013 = vxor.u32 %v1012, 2147483648
    %v1014 = vmul.f32 %v1013, 1.442695
    %v1015 = vpow.pop %v1014
    %v1016 = vadd.f32 %v1015, 1.0
    %v1017 = vrcp.pop %v1016
    %v1018 = vmul.f32 1.0, %v1017
    %v1019 = vadd.f32 %v999, %v516
    %v1020 = vmul.f32 %v1008, %v1019
    %v1021 = vrot.slane %v860, 4
    %v1023 = vadd.f32 %v1021, %v1020
    %v1024 = vtanh.pop %v1023
    %v1025 = vsub.f32 %v856, %v1024
    %v1026 = vmul.f32 %v1018, %v1025
    %v1027 = vadd.f32 %v1024, %v1026
    %s1028 = scalar_lea.vmem [#allocation3], 4
    %1029 = vst [vmem:[%s1028] sm:$0x3] %v1027
    %s1030 = scalar_lea.vmem [#allocation2], 18
    %v1031 = vld [vmem:[%s1030] sm:$0x3f]
    %1032 = vmatprep.subr.mxu0 %v464
    %1033 = vmatpush1.msra.mxu0 %v463
    %1034 = vmatprep.subr.mxu0 %v467
    %1035 = vmatpush1.msra.mxu0 %v466
    %1036 = vmatprep.subr.mxu0 %v470
    %1037 = vmatpush1.msra.mxu0 %v469
    %1038 = vmatprep.subr.mxu0 %v473
    %1039 = vmatpush1.msra.mxu0 %v472
    %1040 = vmatprep.subr.mxu0 %v476
    %1041 = vmatpush1.msra.mxu0 %v475
    %1042 = vmatprep.subr.mxu0 %v479
    %1043 = vmatpush1.msra.mxu0 %v478
    %1044 = vmatprep.subr.mxu0 %v482
    %1045 = vmatpush1.msra.mxu0 %v481
    %1046 = vmatprep.subr.mxu0 %v485
    %1047 = vmatpush1.msra.mxu0 %v484
    %1048 = vmatprep.subr.mxu0 %v488
    %1049 = vmatpush1.msra.mxu0 %v487
    %1050 = vmatprep.subr.mxu0 %v491
    %1051 = vmatpush1.msra.mxu0 %v490
    %1052 = vmatprep.subr.mxu0 %v494
    %1053 = vmatpush1.msra.mxu0 %v493
    %1054 = vmatprep.subr.mxu0 %v497
    %1055 = vmatpush1.msra.mxu0 %v496
    %1056 = vmatprep.subr.mxu0 %v500
    %1057 = vmatpush1.msra.mxu0 %v499
    %1058 = vmatprep.subr.mxu0 %v503
    %1059 = vmatpush1.msra.mxu0 %v502
    %1060 = vmatprep.subr.mxu0 %v506
    %1061 = vmatpush1.msra.mxu0 %v505
    %1062 = vmatprep.subr.mxu0 %v509
    %1063 = vmatpush1.msra.mxu0 %v508
    %1064 = vmatprep.subr.mxu0 0.0
    %1065 = vmatpush1.msra.mxu0 0.0
    %1066 = vmatprep.subr.mxu0 0.0
    %1067 = vmatpush1.msra.mxu0 0.0
    %1068 = vmatprep.subr.mxu0 0.0
    %1069 = vmatpush1.msra.mxu0 0.0
    %1070 = vmatprep.subr.mxu0 0.0
    %1071 = vmatpush1.msra.mxu0 0.0
    %1072 = vmatprep.subr.mxu0 0.0
    %1073 = vmatpush1.msra.mxu0 0.0
    %1074 = vmatprep.subr.mxu0 0.0
    %1075 = vmatpush1.msra.mxu0 0.0
    %1076 = vmatprep.subr.mxu0 0.0
    %1077 = vmatpush1.msra.mxu0 0.0
    %1078 = vmatprep.subr.mxu0 0.0
    %1079 = vmatpush1.msra.mxu0 0.0
    %1080 = vmatprep.subr.mxu0 0.0
    %1081 = vmatpush1.msra.mxu0 0.0
    %1082 = vmatprep.subr.mxu0 0.0
    %1083 = vmatpush1.msra.mxu0 0.0
    %1084 = vmatprep.subr.mxu0 0.0
    %1085 = vmatpush1.msra.mxu0 0.0
    %1086 = vmatprep.subr.mxu0 0.0
    %1087 = vmatpush1.msra.mxu0 0.0
    %1088 = vmatprep.subr.mxu0 0.0
    %1089 = vmatpush1.msra.mxu0 0.0
    %1090 = vmatprep.subr.mxu0 0.0
    %1091 = vmatpush1.msra.mxu0 0.0
    %1092 = vmatprep.subr.mxu0 0.0
    %1093 = vmatpush1.msra.mxu0 0.0
    %1094 = vmatprep.subr.mxu0 0.0
    %1095 = vmatpush1.msra.mxu0 0.0
    %1096 = vmatprep.mubr.f32.mxu0 0.0
    %1097 = vmatmul.mubr.f32.gmra.mrb[0].mxu0 %v1027
    %v1098 = vpop.f32.mrb[0].mxu0
    %v1099 = vadd.f32 0.0, %v1098
    %v1100 = vpop.f32.mrb[0].mxu0
    %v1101 = vadd.f32 0.0, %v1100
    %1102 = vdwg.mxu0
    %1103 = vmatprep.subr.mxu0 0.0
    %1104 = vmatpush1.msra.mxu0 %v465
    %1105 = vmatprep.subr.mxu0 0.0
    %1106 = vmatpush1.msra.mxu0 %v468
    %1107 = vmatprep.subr.mxu0 0.0
    %1108 = vmatpush1.msra.mxu0 %v471
    %1109 = vmatprep.subr.mxu0 0.0
    %1110 = vmatpush1.msra.mxu0 %v474
    %1111 = vmatprep.subr.mxu0 0.0
    %1112 = vmatpush1.msra.mxu0 %v477
    %1113 = vmatprep.subr.mxu0 0.0
    %1114 = vmatpush1.msra.mxu0 %v480
    %1115 = vmatprep.subr.mxu0 0.0
    %1116 = vmatpush1.msra.mxu0 %v483
    %1117 = vmatprep.subr.mxu0 0.0
    %1118 = vmatpush1.msra.mxu0 %v486
    %1119 = vmatprep.subr.mxu0 0.0
    %1120 = vmatpush1.msra.mxu0 %v489
    %1121 = vmatprep.subr.mxu0 0.0
    %1122 = vmatpush1.msra.mxu0 %v492
    %1123 = vmatprep.subr.mxu0 0.0
    %1124 = vmatpush1.msra.mxu0 %v495
    %1125 = vmatprep.subr.mxu0 0.0
    %1126 = vmatpush1.msra.mxu0 %v498
    %1127 = vmatprep.subr.mxu0 0.0
    %1128 = vmatpush1.msra.mxu0 %v501
    %1129 = vmatprep.subr.mxu0 0.0
    %1130 = vmatpush1.msra.mxu0 %v504
    %1131 = vmatprep.subr.mxu0 0.0
    %1132 = vmatpush1.msra.mxu0 %v507
    %1133 = vmatprep.subr.mxu0 0.0
    %1134 = vmatpush1.msra.mxu0 %v510
    %1135 = vmatprep.subr.mxu0 0.0
    %1136 = vmatpush1.msra.mxu0 0.0
    %1137 = vmatprep.subr.mxu0 0.0
    %1138 = vmatpush1.msra.mxu0 0.0
    %1139 = vmatprep.subr.mxu0 0.0
    %1140 = vmatpush1.msra.mxu0 0.0
    %1141 = vmatprep.subr.mxu0 0.0
    %1142 = vmatpush1.msra.mxu0 0.0
    %1143 = vmatprep.subr.mxu0 0.0
    %1144 = vmatpush1.msra.mxu0 0.0
    %1145 = vmatprep.subr.mxu0 0.0
    %1146 = vmatpush1.msra.mxu0 0.0
    %1147 = vmatprep.subr.mxu0 0.0
    %1148 = vmatpush1.msra.mxu0 0.0
    %1149 = vmatprep.subr.mxu0 0.0
    %1150 = vmatpush1.msra.mxu0 0.0
    %1151 = vmatprep.subr.mxu0 0.0
    %1152 = vmatpush1.msra.mxu0 0.0
    %1153 = vmatprep.subr.mxu0 0.0
    %1154 = vmatpush1.msra.mxu0 0.0
    %1155 = vmatprep.subr.mxu0 0.0
    %1156 = vmatpush1.msra.mxu0 0.0
    %1157 = vmatprep.subr.mxu0 0.0
    %1158 = vmatpush1.msra.mxu0 0.0
    %1159 = vmatprep.subr.mxu0 0.0
    %1160 = vmatpush1.msra.mxu0 0.0
    %1161 = vmatprep.subr.mxu0 0.0
    %1162 = vmatpush1.msra.mxu0 0.0
    %1163 = vmatprep.subr.mxu0 0.0
    %1164 = vmatpush1.msra.mxu0 0.0
    %1165 = vmatprep.subr.mxu0 0.0
    %1166 = vmatpush1.msra.mxu0 0.0
    %1167 = vmatprep.mubr.f32.mxu0 0.0
    %1168 = vmatmul.mubr.f32.gmra.mrb[0].mxu0 %v1027
    %v1169 = vpop.f32.mrb[0].mxu0
    %v1170 = vadd.f32 0.0, %v1169
    %v1171 = vpop.f32.mrb[0].mxu0
    %1172 = vdwg.mxu0
    %v1173 = vadd.f32 %v1031, %v1099
    %v1174 = vxor.u32 %v1173, 2147483648
    %v1175 = vmul.f32 %v1174, 1.442695
    %v1176 = vpow.pop %v1175
    %v1177 = vadd.f32 %v1176, 1.0
    %v1178 = vrcp.pop %v1177
    %v1179 = vmul.f32 1.0, %v1178
    %v1181 = vrot.slane %v1031, 2
    %v1183 = vadd.f32 %v1181, %v1101
    %v1184 = vxor.u32 %v1183, 2147483648
    %v1185 = vmul.f32 %v1184, 1.442695
    %v1186 = vpow.pop %v1185
    %v1187 = vadd.f32 %v1186, 1.0
    %v1188 = vrcp.pop %v1187
    %v1189 = vmul.f32 1.0, %v1188
    %v1190 = vadd.f32 %v1170, %v516
    %v1191 = vmul.f32 %v1179, %v1190
    %v1192 = vrot.slane %v1031, 4
    %v1194 = vadd.f32 %v1192, %v1191
    %v1195 = vtanh.pop %v1194
    %v1196 = vsub.f32 %v1027, %v1195
    %v1197 = vmul.f32 %v1189, %v1196
    %v1198 = vadd.f32 %v1195, %v1197
    %s1199 = scalar_lea.vmem [#allocation3], 6
    %1200 = vst [vmem:[%s1199] sm:$0x3] %v1198
    %s1201 = scalar_lea.vmem [#allocation2], 24
    %v1202 = vld [vmem:[%s1201] sm:$0x3f]
    %1203 = vmatprep.subr.mxu0 %v464
    %1204 = vmatpush1.msra.mxu0 %v463
    %1205 = vmatprep.subr.mxu0 %v467
    %1206 = vmatpush1.msra.mxu0 %v466
    %1207 = vmatprep.subr.mxu0 %v470
    %1208 = vmatpush1.msra.mxu0 %v469
    %1209 = vmatprep.subr.mxu0 %v473
    %1210 = vmatpush1.msra.mxu0 %v472
    %1211 = vmatprep.subr.mxu0 %v476
    %1212 = vmatpush1.msra.mxu0 %v475
    %1213 = vmatprep.subr.mxu0 %v479
    %1214 = vmatpush1.msra.mxu0 %v478
    %1215 = vmatprep.subr.mxu0 %v482
    %1216 = vmatpush1.msra.mxu0 %v481
    %1217 = vmatprep.subr.mxu0 %v485
    %1218 = vmatpush1.msra.mxu0 %v484
    %1219 = vmatprep.subr.mxu0 %v488
    %1220 = vmatpush1.msra.mxu0 %v487
    %1221 = vmatprep.subr.mxu0 %v491
    %1222 = vmatpush1.msra.mxu0 %v490
    %1223 = vmatprep.subr.mxu0 %v494
    %1224 = vmatpush1.msra.mxu0 %v493
    %1225 = vmatprep.subr.mxu0 %v497
    %1226 = vmatpush1.msra.mxu0 %v496
    %1227 = vmatprep.subr.mxu0 %v500
    %1228 = vmatpush1.msra.mxu0 %v499
    %1229 = vmatprep.subr.mxu0 %v503
    %1230 = vmatpush1.msra.mxu0 %v502
    %1231 = vmatprep.subr.mxu0 %v506
    %1232 = vmatpush1.msra.mxu0 %v505
    %1233 = vmatprep.subr.mxu0 %v509
    %1234 = vmatpush1.msra.mxu0 %v508
    %1235 = vmatprep.subr.mxu0 0.0
    %1236 = vmatpush1.msra.mxu0 0.0
    %1237 = vmatprep.subr.mxu0 0.0
    %1238 = vmatpush1.msra.mxu0 0.0
    %1239 = vmatprep.subr.mxu0 0.0
    %1240 = vmatpush1.msra.mxu0 0.0
    %1241 = vmatprep.subr.mxu0 0.0
    %1242 = vmatpush1.msra.mxu0 0.0
    %1243 = vmatprep.subr.mxu0 0.0
    %1244 = vmatpush1.msra.mxu0 0.0
    %1245 = vmatprep.subr.mxu0 0.0
    %1246 = vmatpush1.msra.mxu0 0.0
    %1247 = vmatprep.subr.mxu0 0.0
    %1248 = vmatpush1.msra.mxu0 0.0
    %1249 = vmatprep.subr.mxu0 0.0
    %1250 = vmatpush1.msra.mxu0 0.0
    %1251 = vmatprep.subr.mxu0 0.0
    %1252 = vmatpush1.msra.mxu0 0.0
    %1253 = vmatprep.subr.mxu0 0.0
    %1254 = vmatpush1.msra.mxu0 0.0
    %1255 = vmatprep.subr.mxu0 0.0
    %1256 = vmatpush1.msra.mxu0 0.0
    %1257 = vmatprep.subr.mxu0 0.0
    %1258 = vmatpush1.msra.mxu0 0.0
    %1259 = vmatprep.subr.mxu0 0.0
    %1260 = vmatpush1.msra.mxu0 0.0
    %1261 = vmatprep.subr.mxu0 0.0
    %1262 = vmatpush1.msra.mxu0 0.0
    %1263 = vmatprep.subr.mxu0 0.0
    %1264 = vmatpush1.msra.mxu0 0.0
    %1265 = vmatprep.subr.mxu0 0.0
    %1266 = vmatpush1.msra.mxu0 0.0
    %1267 = vmatprep.mubr.f32.mxu0 0.0
    %1268 = vmatmul.mubr.f32.gmra.mrb[0].mxu0 %v1198
    %v1269 = vpop.f32.mrb[0].mxu0
    %v1270 = vadd.f32 0.0, %v1269
    %v1271 = vpop.f32.mrb[0].mxu0
    %v1272 = vadd.f32 0.0, %v1271
    %1273 = vdwg.mxu0
    %1274 = vmatprep.subr.mxu0 0.0
    %1275 = vmatpush1.msra.mxu0 %v465
    %1276 = vmatprep.subr.mxu0 0.0
    %1277 = vmatpush1.msra.mxu0 %v468
    %1278 = vmatprep.subr.mxu0 0.0
    %1279 = vmatpush1.msra.mxu0 %v471
    %1280 = vmatprep.subr.mxu0 0.0
    %1281 = vmatpush1.msra.mxu0 %v474
    %1282 = vmatprep.subr.mxu0 0.0
    %1283 = vmatpush1.msra.mxu0 %v477
    %1284 = vmatprep.subr.mxu0 0.0
    %1285 = vmatpush1.msra.mxu0 %v480
    %1286 = vmatprep.subr.mxu0 0.0
    %1287 = vmatpush1.msra.mxu0 %v483
    %1288 = vmatprep.subr.mxu0 0.0
    %1289 = vmatpush1.msra.mxu0 %v486
    %1290 = vmatprep.subr.mxu0 0.0
    %1291 = vmatpush1.msra.mxu0 %v489
    %1292 = vmatprep.subr.mxu0 0.0
    %1293 = vmatpush1.msra.mxu0 %v492
    %1294 = vmatprep.subr.mxu0 0.0
    %1295 = vmatpush1.msra.mxu0 %v495
    %1296 = vmatprep.subr.mxu0 0.0
    %1297 = vmatpush1.msra.mxu0 %v498
    %1298 = vmatprep.subr.mxu0 0.0
    %1299 = vmatpush1.msra.mxu0 %v501
    %1300 = vmatprep.subr.mxu0 0.0
    %1301 = vmatpush1.msra.mxu0 %v504
    %1302 = vmatprep.subr.mxu0 0.0
    %1303 = vmatpush1.msra.mxu0 %v507
    %1304 = vmatprep.subr.mxu0 0.0
    %1305 = vmatpush1.msra.mxu0 %v510
    %1306 = vmatprep.subr.mxu0 0.0
    %1307 = vmatpush1.msra.mxu0 0.0
    %1308 = vmatprep.subr.mxu0 0.0
    %1309 = vmatpush1.msra.mxu0 0.0
    %1310 = vmatprep.subr.mxu0 0.0
    %1311 = vmatpush1.msra.mxu0 0.0
    %1312 = vmatprep.subr.mxu0 0.0
    %1313 = vmatpush1.msra.mxu0 0.0
    %1314 = vmatprep.subr.mxu0 0.0
    %1315 = vmatpush1.msra.mxu0 0.0
    %1316 = vmatprep.subr.mxu0 0.0
    %1317 = vmatpush1.msra.mxu0 0.0
    %1318 = vmatprep.subr.mxu0 0.0
    %1319 = vmatpush1.msra.mxu0 0.0
    %1320 = vmatprep.subr.mxu0 0.0
    %1321 = vmatpush1.msra.mxu0 0.0
    %1322 = vmatprep.subr.mxu0 0.0
    %1323 = vmatpush1.msra.mxu0 0.0
    %1324 = vmatprep.subr.mxu0 0.0
    %1325 = vmatpush1.msra.mxu0 0.0
    %1326 = vmatprep.subr.mxu0 0.0
    %1327 = vmatpush1.msra.mxu0 0.0
    %1328 = vmatprep.subr.mxu0 0.0
    %1329 = vmatpush1.msra.mxu0 0.0
    %1330 = vmatprep.subr.mxu0 0.0
    %1331 = vmatpush1.msra.mxu0 0.0
    %1332 = vmatprep.subr.mxu0 0.0
    %1333 = vmatpush1.msra.mxu0 0.0
    %1334 = vmatprep.subr.mxu0 0.0
    %1335 = vmatpush1.msra.mxu0 0.0
    %1336 = vmatprep.subr.mxu0 0.0
    %1337 = vmatpush1.msra.mxu0 0.0
    %1338 = vmatprep.mubr.f32.mxu0 0.0
    %1339 = vmatmul.mubr.f32.gmra.mrb[0].mxu0 %v1198
    %v1340 = vpop.f32.mrb[0].mxu0
    %v1341 = vadd.f32 0.0, %v1340
    %v1342 = vpop.f32.mrb[0].mxu0
    %1343 = vdwg.mxu0
    %v1344 = vadd.f32 %v1202, %v1270
    %v1345 = vxor.u32 %v1344, 2147483648
    %v1346 = vmul.f32 %v1345, 1.442695
    %v1347 = vpow.pop %v1346
    %v1348 = vadd.f32 %v1347, 1.0
    %v1349 = vrcp.pop %v1348
    %v1350 = vmul.f32 1.0, %v1349
    %v1352 = vrot.slane %v1202, 2
    %v1354 = vadd.f32 %v1352, %v1272
    %v1355 = vxor.u32 %v1354, 2147483648
    %v1356 = vmul.f32 %v1355, 1.442695
    %v1357 = vpow.pop %v1356
    %v1358 = vadd.f32 %v1357, 1.0
    %v1359 = vrcp.pop %v1358
    %v1360 = vmul.f32 1.0, %v1359
    %v1361 = vadd.f32 %v1341, %v516
    %v1362 = vmul.f32 %v1350, %v1361
    %v1363 = vrot.slane %v1202, 4
    %v1365 = vadd.f32 %v1363, %v1362
    %v1366 = vtanh.pop %v1365
    %v1367 = vsub.f32 %v1198, %v1366
    %v1368 = vmul.f32 %v1360, %v1367
    %v1369 = vadd.f32 %v1366, %v1368
    %s1370 = scalar_lea.vmem [#allocation3], 8
    %1371 = vst [vmem:[%s1370] sm:$0x3] %v1369
    %s1372 = scalar_lea.vmem [#allocation2], 30
    %v1373 = vld [vmem:[%s1372] sm:$0x3f]
    %1374 = vmatprep.subr.mxu0 %v464
    %1375 = vmatpush1.msra.mxu0 %v463
    %1376 = vmatprep.subr.mxu0 %v467
    %1377 = vmatpush1.msra.mxu0 %v466
    %1378 = vmatprep.subr.mxu0 %v470
    %1379 = vmatpush1.msra.mxu0 %v469
    %1380 = vmatprep.subr.mxu0 %v473
    %1381 = vmatpush1.msra.mxu0 %v472
    %1382 = vmatprep.subr.mxu0 %v476
    %1383 = vmatpush1.msra.mxu0 %v475
    %1384 = vmatprep.subr.mxu0 %v479
    %1385 = vmatpush1.msra.mxu0 %v478
    %1386 = vmatprep.subr.mxu0 %v482
    %1387 = vmatpush1.msra.mxu0 %v481
    %1388 = vmatprep.subr.mxu0 %v485
    %1389 = vmatpush1.msra.mxu0 %v484
    %1390 = vmatprep.subr.mxu0 %v488
    %1391 = vmatpush1.msra.mxu0 %v487
    %1392 = vmatprep.subr.mxu0 %v491
    %1393 = vmatpush1.msra.mxu0 %v490
    %1394 = vmatprep.subr.mxu0 %v494
    %1395 = vmatpush1.msra.mxu0 %v493
    %1396 = vmatprep.subr.mxu0 %v497
    %1397 = vmatpush1.msra.mxu0 %v496
    %1398 = vmatprep.subr.mxu0 %v500
    %1399 = vmatpush1.msra.mxu0 %v499
    %1400 = vmatprep.subr.mxu0 %v503
    %1401 = vmatpush1.msra.mxu0 %v502
    %1402 = vmatprep.subr.mxu0 %v506
    %1403 = vmatpush1.msra.mxu0 %v505
    %1404 = vmatprep.subr.mxu0 %v509
    %1405 = vmatpush1.msra.mxu0 %v508
    %1406 = vmatprep.subr.mxu0 0.0
    %1407 = vmatpush1.msra.mxu0 0.0
    %1408 = vmatprep.subr.mxu0 0.0
    %1409 = vmatpush1.msra.mxu0 0.0
    %1410 = vmatprep.subr.mxu0 0.0
    %1411 = vmatpush1.msra.mxu0 0.0
    %1412 = vmatprep.subr.mxu0 0.0
    %1413 = vmatpush1.msra.mxu0 0.0
    %1414 = vmatprep.subr.mxu0 0.0
    %1415 = vmatpush1.msra.mxu0 0.0
    %1416 = vmatprep.subr.mxu0 0.0
    %1417 = vmatpush1.msra.mxu0 0.0
    %1418 = vmatprep.subr.mxu0 0.0
    %1419 = vmatpush1.msra.mxu0 0.0
    %1420 = vmatprep.subr.mxu0 0.0
    %1421 = vmatpush1.msra.mxu0 0.0
    %1422 = vmatprep.subr.mxu0 0.0
    %1423 = vmatpush1.msra.mxu0 0.0
    %1424 = vmatprep.subr.mxu0 0.0
    %1425 = vmatpush1.msra.mxu0 0.0
    %1426 = vmatprep.subr.mxu0 0.0
    %1427 = vmatpush1.msra.mxu0 0.0
    %1428 = vmatprep.subr.mxu0 0.0
    %1429 = vmatpush1.msra.mxu0 0.0
    %1430 = vmatprep.subr.mxu0 0.0
    %1431 = vmatpush1.msra.mxu0 0.0
    %1432 = vmatprep.subr.mxu0 0.0
    %1433 = vmatpush1.msra.mxu0 0.0
    %1434 = vmatprep.subr.mxu0 0.0
    %1435 = vmatpush1.msra.mxu0 0.0
    %1436 = vmatprep.subr.mxu0 0.0
    %1437 = vmatpush1.msra.mxu0 0.0
    %1438 = vmatprep.mubr.f32.mxu0 0.0
    %1439 = vmatmul.mubr.f32.gmra.mrb[0].mxu0 %v1369
    %v1440 = vpop.f32.mrb[0].mxu0
    %v1441 = vadd.f32 0.0, %v1440
    %v1442 = vpop.f32.mrb[0].mxu0
    %v1443 = vadd.f32 0.0, %v1442
    %1444 = vdwg.mxu0
    %1445 = vmatprep.subr.mxu0 0.0
    %1446 = vmatpush1.msra.mxu0 %v465
    %1447 = vmatprep.subr.mxu0 0.0
    %1448 = vmatpush1.msra.mxu0 %v468
    %1449 = vmatprep.subr.mxu0 0.0
    %1450 = vmatpush1.msra.mxu0 %v471
    %1451 = vmatprep.subr.mxu0 0.0
    %1452 = vmatpush1.msra.mxu0 %v474
    %1453 = vmatprep.subr.mxu0 0.0
    %1454 = vmatpush1.msra.mxu0 %v477
    %1455 = vmatprep.subr.mxu0 0.0
    %1456 = vmatpush1.msra.mxu0 %v480
    %1457 = vmatprep.subr.mxu0 0.0
    %1458 = vmatpush1.msra.mxu0 %v483
    %1459 = vmatprep.subr.mxu0 0.0
    %1460 = vmatpush1.msra.mxu0 %v486
    %1461 = vmatprep.subr.mxu0 0.0
    %1462 = vmatpush1.msra.mxu0 %v489
    %1463 = vmatprep.subr.mxu0 0.0
    %1464 = vmatpush1.msra.mxu0 %v492
    %1465 = vmatprep.subr.mxu0 0.0
    %1466 = vmatpush1.msra.mxu0 %v495
    %1467 = vmatprep.subr.mxu0 0.0
    %1468 = vmatpush1.msra.mxu0 %v498
    %1469 = vmatprep.subr.mxu0 0.0
    %1470 = vmatpush1.msra.mxu0 %v501
    %1471 = vmatprep.subr.mxu0 0.0
    %1472 = vmatpush1.msra.mxu0 %v504
    %1473 = vmatprep.subr.mxu0 0.0
    %1474 = vmatpush1.msra.mxu0 %v507
    %1475 = vmatprep.subr.mxu0 0.0
    %1476 = vmatpush1.msra.mxu0 %v510
    %1477 = vmatprep.subr.mxu0 0.0
    %1478 = vmatpush1.msra.mxu0 0.0
    %1479 = vmatprep.subr.mxu0 0.0
    %1480 = vmatpush1.msra.mxu0 0.0
    %1481 = vmatprep.subr.mxu0 0.0
    %1482 = vmatpush1.msra.mxu0 0.0
    %1483 = vmatprep.subr.mxu0 0.0
    %1484 = vmatpush1.msra.mxu0 0.0
    %1485 = vmatprep.subr.mxu0 0.0
    %1486 = vmatpush1.msra.mxu0 0.0
    %1487 = vmatprep.subr.mxu0 0.0
    %1488 = vmatpush1.msra.mxu0 0.0
    %1489 = vmatprep.subr.mxu0 0.0
    %1490 = vmatpush1.msra.mxu0 0.0
    %1491 = vmatprep.subr.mxu0 0.0
    %1492 = vmatpush1.msra.mxu0 0.0
    %1493 = vmatprep.subr.mxu0 0.0
    %1494 = vmatpush1.msra.mxu0 0.0
    %1495 = vmatprep.subr.mxu0 0.0
    %1496 = vmatpush1.msra.mxu0 0.0
    %1497 = vmatprep.subr.mxu0 0.0
    %1498 = vmatpush1.msra.mxu0 0.0
    %1499 = vmatprep.subr.mxu0 0.0
    %1500 = vmatpush1.msra.mxu0 0.0
    %1501 = vmatprep.subr.mxu0 0.0
    %1502 = vmatpush1.msra.mxu0 0.0
    %1503 = vmatprep.subr.mxu0 0.0
    %1504 = vmatpush1.msra.mxu0 0.0
    %1505 = vmatprep.subr.mxu0 0.0
    %1506 = vmatpush1.msra.mxu0 0.0
    %1507 = vmatprep.subr.mxu0 0.0
    %1508 = vmatpush1.msra.mxu0 0.0
    %1509 = vmatprep.mubr.f32.mxu0 0.0
    %1510 = vmatmul.mubr.f32.gmra.mrb[0].mxu0 %v1369
    %v1511 = vpop.f32.mrb[0].mxu0
    %v1512 = vadd.f32 0.0, %v1511
    %v1513 = vpop.f32.mrb[0].mxu0
    %1514 = vdwg.mxu0
    %v1515 = vadd.f32 %v1373, %v1441
    %v1516 = vxor.u32 %v1515, 2147483648
    %v1517 = vmul.f32 %v1516, 1.442695
    %v1518 = vpow.pop %v1517
    %v1519 = vadd.f32 %v1518, 1.0
    %v1520 = vrcp.pop %v1519
    %v1521 = vmul.f32 1.0, %v1520
    %v1523 = vrot.slane %v1373, 2
    %v1525 = vadd.f32 %v1523, %v1443
    %v1526 = vxor.u32 %v1525, 2147483648
    %v1527 = vmul.f32 %v1526, 1.442695
    %v1528 = vpow.pop %v1527
    %v1529 = vadd.f32 %v1528, 1.0
    %v1530 = vrcp.pop %v1529
    %v1531 = vmul.f32 1.0, %v1530
    %v1532 = vadd.f32 %v1512, %v516
    %v1533 = vmul.f32 %v1521, %v1532
    %v1534 = vrot.slane %v1373, 4
    %v1536 = vadd.f32 %v1534, %v1533
    %v1537 = vtanh.pop %v1536
    %v1538 = vsub.f32 %v1369, %v1537
    %v1539 = vmul.f32 %v1531, %v1538
    %v1540 = vadd.f32 %v1537, %v1539
    %s1541 = scalar_lea.vmem [#allocation3], 10
    %1542 = vst [vmem:[%s1541] sm:$0x3] %v1540
    %s1543 = scalar_lea.vmem [#allocation2], 36
    %v1544 = vld [vmem:[%s1543] sm:$0x3f]
    %1545 = vmatprep.subr.mxu0 %v464
    %1546 = vmatpush1.msra.mxu0 %v463
    %1547 = vmatprep.subr.mxu0 %v467
    %1548 = vmatpush1.msra.mxu0 %v466
    %1549 = vmatprep.subr.mxu0 %v470
    %1550 = vmatpush1.msra.mxu0 %v469
    %1551 = vmatprep.subr.mxu0 %v473
    %1552 = vmatpush1.msra.mxu0 %v472
    %1553 = vmatprep.subr.mxu0 %v476
    %1554 = vmatpush1.msra.mxu0 %v475
    %1555 = vmatprep.subr.mxu0 %v479
    %1556 = vmatpush1.msra.mxu0 %v478
    %1557 = vmatprep.subr.mxu0 %v482
    %1558 = vmatpush1.msra.mxu0 %v481
    %1559 = vmatprep.subr.mxu0 %v485
    %1560 = vmatpush1.msra.mxu0 %v484
    %1561 = vmatprep.subr.mxu0 %v488
    %1562 = vmatpush1.msra.mxu0 %v487
    %1563 = vmatprep.subr.mxu0 %v491
    %1564 = vmatpush1.msra.mxu0 %v490
    %1565 = vmatprep.subr.mxu0 %v494
    %1566 = vmatpush1.msra.mxu0 %v493
    %1567 = vmatprep.subr.mxu0 %v497
    %1568 = vmatpush1.msra.mxu0 %v496
    %1569 = vmatprep.subr.mxu0 %v500
    %1570 = vmatpush1.msra.mxu0 %v499
    %1571 = vmatprep.subr.mxu0 %v503
    %1572 = vmatpush1.msra.mxu0 %v502
    %1573 = vmatprep.subr.mxu0 %v506
    %1574 = vmatpush1.msra.mxu0 %v505
    %1575 = vmatprep.subr.mxu0 %v509
    %1576 = vmatpush1.msra.mxu0 %v508
    %1577 = vmatprep.subr.mxu0 0.0
    %1578 = vmatpush1.msra.mxu0 0.0
    %1579 = vmatprep.subr.mxu0 0.0
    %1580 = vmatpush1.msra.mxu0 0.0
    %1581 = vmatprep.subr.mxu0 0.0
    %1582 = vmatpush1.msra.mxu0 0.0
    %1583 = vmatprep.subr.mxu0 0.0
    %1584 = vmatpush1.msra.mxu0 0.0
    %1585 = vmatprep.subr.mxu0 0.0
    %1586 = vmatpush1.msra.mxu0 0.0
    %1587 = vmatprep.subr.mxu0 0.0
    %1588 = vmatpush1.msra.mxu0 0.0
    %1589 = vmatprep.subr.mxu0 0.0
    %1590 = vmatpush1.msra.mxu0 0.0
    %1591 = vmatprep.subr.mxu0 0.0
    %1592 = vmatpush1.msra.mxu0 0.0
    %1593 = vmatprep.subr.mxu0 0.0
    %1594 = vmatpush1.msra.mxu0 0.0
    %1595 = vmatprep.subr.mxu0 0.0
    %1596 = vmatpush1.msra.mxu0 0.0
    %1597 = vmatprep.subr.mxu0 0.0
    %1598 = vmatpush1.msra.mxu0 0.0
    %1599 = vmatprep.subr.mxu0 0.0
    %1600 = vmatpush1.msra.mxu0 0.0
    %1601 = vmatprep.subr.mxu0 0.0
    %1602 = vmatpush1.msra.mxu0 0.0
    %1603 = vmatprep.subr.mxu0 0.0
    %1604 = vmatpush1.msra.mxu0 0.0
    %1605 = vmatprep.subr.mxu0 0.0
    %1606 = vmatpush1.msra.mxu0 0.0
    %1607 = vmatprep.subr.mxu0 0.0
    %1608 = vmatpush1.msra.mxu0 0.0
    %1609 = vmatprep.mubr.f32.mxu0 0.0
    %1610 = vmatmul.mubr.f32.gmra.mrb[0].mxu0 %v1540
    %v1611 = vpop.f32.mrb[0].mxu0
    %v1612 = vadd.f32 0.0, %v1611
    %v1613 = vpop.f32.mrb[0].mxu0
    %v1614 = vadd.f32 0.0, %v1613
    %1615 = vdwg.mxu0
    %1616 = vmatprep.subr.mxu0 0.0
    %1617 = vmatpush1.msra.mxu0 %v465
    %1618 = vmatprep.subr.mxu0 0.0
    %1619 = vmatpush1.msra.mxu0 %v468
    %1620 = vmatprep.subr.mxu0 0.0
    %1621 = vmatpush1.msra.mxu0 %v471
    %1622 = vmatprep.subr.mxu0 0.0
    %1623 = vmatpush1.msra.mxu0 %v474
    %1624 = vmatprep.subr.mxu0 0.0
    %1625 = vmatpush1.msra.mxu0 %v477
    %1626 = vmatprep.subr.mxu0 0.0
    %1627 = vmatpush1.msra.mxu0 %v480
    %1628 = vmatprep.subr.mxu0 0.0
    %1629 = vmatpush1.msra.mxu0 %v483
    %1630 = vmatprep.subr.mxu0 0.0
    %1631 = vmatpush1.msra.mxu0 %v486
    %1632 = vmatprep.subr.mxu0 0.0
    %1633 = vmatpush1.msra.mxu0 %v489
    %1634 = vmatprep.subr.mxu0 0.0
    %1635 = vmatpush1.msra.mxu0 %v492
    %1636 = vmatprep.subr.mxu0 0.0
    %1637 = vmatpush1.msra.mxu0 %v495
    %1638 = vmatprep.subr.mxu0 0.0
    %1639 = vmatpush1.msra.mxu0 %v498
    %1640 = vmatprep.subr.mxu0 0.0
    %1641 = vmatpush1.msra.mxu0 %v501
    %1642 = vmatprep.subr.mxu0 0.0
    %1643 = vmatpush1.msra.mxu0 %v504
    %1644 = vmatprep.subr.mxu0 0.0
    %1645 = vmatpush1.msra.mxu0 %v507
    %1646 = vmatprep.subr.mxu0 0.0
    %1647 = vmatpush1.msra.mxu0 %v510
    %1648 = vmatprep.subr.mxu0 0.0
    %1649 = vmatpush1.msra.mxu0 0.0
    %1650 = vmatprep.subr.mxu0 0.0
    %1651 = vmatpush1.msra.mxu0 0.0
    %1652 = vmatprep.subr.mxu0 0.0
    %1653 = vmatpush1.msra.mxu0 0.0
    %1654 = vmatprep.subr.mxu0 0.0
    %1655 = vmatpush1.msra.mxu0 0.0
    %1656 = vmatprep.subr.mxu0 0.0
    %1657 = vmatpush1.msra.mxu0 0.0
    %1658 = vmatprep.subr.mxu0 0.0
    %1659 = vmatpush1.msra.mxu0 0.0
    %1660 = vmatprep.subr.mxu0 0.0
    %1661 = vmatpush1.msra.mxu0 0.0
    %1662 = vmatprep.subr.mxu0 0.0
    %1663 = vmatpush1.msra.mxu0 0.0
    %1664 = vmatprep.subr.mxu0 0.0
    %1665 = vmatpush1.msra.mxu0 0.0
    %1666 = vmatprep.subr.mxu0 0.0
    %1667 = vmatpush1.msra.mxu0 0.0
    %1668 = vmatprep.subr.mxu0 0.0
    %1669 = vmatpush1.msra.mxu0 0.0
    %1670 = vmatprep.subr.mxu0 0.0
    %1671 = vmatpush1.msra.mxu0 0.0
    %1672 = vmatprep.subr.mxu0 0.0
    %1673 = vmatpush1.msra.mxu0 0.0
    %1674 = vmatprep.subr.mxu0 0.0
    %1675 = vmatpush1.msra.mxu0 0.0
    %1676 = vmatprep.subr.mxu0 0.0
    %1677 = vmatpush1.msra.mxu0 0.0
    %1678 = vmatprep.subr.mxu0 0.0
    %1679 = vmatpush1.msra.mxu0 0.0
    %1680 = vmatprep.mubr.f32.mxu0 0.0
    %1681 = vmatmul.mubr.f32.gmra.mrb[0].mxu0 %v1540
    %v1682 = vpop.f32.mrb[0].mxu0
    %v1683 = vadd.f32 0.0, %v1682
    %v1684 = vpop.f32.mrb[0].mxu0
    %1685 = vdwg.mxu0
    %v1686 = vadd.f32 %v1544, %v1612
    %v1687 = vxor.u32 %v1686, 2147483648
    %v1688 = vmul.f32 %v1687, 1.442695
    %v1689 = vpow.pop %v1688
    %v1690 = vadd.f32 %v1689, 1.0
    %v1691 = vrcp.pop %v1690
    %v1692 = vmul.f32 1.0, %v1691
    %v1694 = vrot.slane %v1544, 2
    %v1696 = vadd.f32 %v1694, %v1614
    %v1697 = vxor.u32 %v1696, 2147483648
    %v1698 = vmul.f32 %v1697, 1.442695
    %v1699 = vpow.pop %v1698
    %v1700 = vadd.f32 %v1699, 1.0
    %v1701 = vrcp.pop %v1700
    %v1702 = vmul.f32 1.0, %v1701
    %v1703 = vadd.f32 %v1683, %v516
    %v1704 = vmul.f32 %v1692, %v1703
    %v1705 = vrot.slane %v1544, 4
    %v1707 = vadd.f32 %v1705, %v1704
    %v1708 = vtanh.pop %v1707
    %v1709 = vsub.f32 %v1540, %v1708
    %v1710 = vmul.f32 %v1702, %v1709
    %v1711 = vadd.f32 %v1708, %v1710
    %s1712 = scalar_lea.vmem [#allocation3], 12
    %1713 = vst [vmem:[%s1712] sm:$0x3] %v1711
    %s1714 = scalar_lea.vmem [#allocation2], 42
    %v1715 = vld [vmem:[%s1714] sm:$0x3f]
    %1716 = vmatprep.subr.mxu0 %v464
    %1717 = vmatpush1.msra.mxu0 %v463
    %1718 = vmatprep.subr.mxu0 %v467
    %1719 = vmatpush1.msra.mxu0 %v466
    %1720 = vmatprep.subr.mxu0 %v470
    %1721 = vmatpush1.msra.mxu0 %v469
    %1722 = vmatprep.subr.mxu0 %v473
    %1723 = vmatpush1.msra.mxu0 %v472
    %1724 = vmatprep.subr.mxu0 %v476
    %1725 = vmatpush1.msra.mxu0 %v475
    %1726 = vmatprep.subr.mxu0 %v479
    %1727 = vmatpush1.msra.mxu0 %v478
    %1728 = vmatprep.subr.mxu0 %v482
    %1729 = vmatpush1.msra.mxu0 %v481
    %1730 = vmatprep.subr.mxu0 %v485
    %1731 = vmatpush1.msra.mxu0 %v484
    %1732 = vmatprep.subr.mxu0 %v488
    %1733 = vmatpush1.msra.mxu0 %v487
    %1734 = vmatprep.subr.mxu0 %v491
    %1735 = vmatpush1.msra.mxu0 %v490
    %1736 = vmatprep.subr.mxu0 %v494
    %1737 = vmatpush1.msra.mxu0 %v493
    %1738 = vmatprep.subr.mxu0 %v497
    %1739 = vmatpush1.msra.mxu0 %v496
    %1740 = vmatprep.subr.mxu0 %v500
    %1741 = vmatpush1.msra.mxu0 %v499
    %1742 = vmatprep.subr.mxu0 %v503
    %1743 = vmatpush1.msra.mxu0 %v502
    %1744 = vmatprep.subr.mxu0 %v506
    %1745 = vmatpush1.msra.mxu0 %v505
    %1746 = vmatprep.subr.mxu0 %v509
    %1747 = vmatpush1.msra.mxu0 %v508
    %1748 = vmatprep.subr.mxu0 0.0
    %1749 = vmatpush1.msra.mxu0 0.0
    %1750 = vmatprep.subr.mxu0 0.0
    %1751 = vmatpush1.msra.mxu0 0.0
    %1752 = vmatprep.subr.mxu0 0.0
    %1753 = vmatpush1.msra.mxu0 0.0
    %1754 = vmatprep.subr.mxu0 0.0
    %1755 = vmatpush1.msra.mxu0 0.0
    %1756 = vmatprep.subr.mxu0 0.0
    %1757 = vmatpush1.msra.mxu0 0.0
    %1758 = vmatprep.subr.mxu0 0.0
    %1759 = vmatpush1.msra.mxu0 0.0
    %1760 = vmatprep.subr.mxu0 0.0
    %1761 = vmatpush1.msra.mxu0 0.0
    %1762 = vmatprep.subr.mxu0 0.0
    %1763 = vmatpush1.msra.mxu0 0.0
    %1764 = vmatprep.subr.mxu0 0.0
    %1765 = vmatpush1.msra.mxu0 0.0
    %1766 = vmatprep.subr.mxu0 0.0
    %1767 = vmatpush1.msra.mxu0 0.0
    %1768 = vmatprep.subr.mxu0 0.0
    %1769 = vmatpush1.msra.mxu0 0.0
    %1770 = vmatprep.subr.mxu0 0.0
    %1771 = vmatpush1.msra.mxu0 0.0
    %1772 = vmatprep.subr.mxu0 0.0
    %1773 = vmatpush1.msra.mxu0 0.0
    %1774 = vmatprep.subr.mxu0 0.0
    %1775 = vmatpush1.msra.mxu0 0.0
    %1776 = vmatprep.subr.mxu0 0.0
    %1777 = vmatpush1.msra.mxu0 0.0
    %1778 = vmatprep.subr.mxu0 0.0
    %1779 = vmatpush1.msra.mxu0 0.0
    %1780 = vmatprep.mubr.f32.mxu0 0.0
    %1781 = vmatmul.mubr.f32.gmra.mrb[0].mxu0 %v1711
    %v1782 = vpop.f32.mrb[0].mxu0
    %v1783 = vadd.f32 0.0, %v1782
    %v1784 = vpop.f32.mrb[0].mxu0
    %v1785 = vadd.f32 0.0, %v1784
    %1786 = vdwg.mxu0
    %1787 = vmatprep.subr.mxu0 0.0
    %1788 = vmatpush1.msra.mxu0 %v465
    %1789 = vmatprep.subr.mxu0 0.0
    %1790 = vmatpush1.msra.mxu0 %v468
    %1791 = vmatprep.subr.mxu0 0.0
    %1792 = vmatpush1.msra.mxu0 %v471
    %1793 = vmatprep.subr.mxu0 0.0
    %1794 = vmatpush1.msra.mxu0 %v474
    %1795 = vmatprep.subr.mxu0 0.0
    %1796 = vmatpush1.msra.mxu0 %v477
    %1797 = vmatprep.subr.mxu0 0.0
    %1798 = vmatpush1.msra.mxu0 %v480
    %1799 = vmatprep.subr.mxu0 0.0
    %1800 = vmatpush1.msra.mxu0 %v483
    %1801 = vmatprep.subr.mxu0 0.0
    %1802 = vmatpush1.msra.mxu0 %v486
    %1803 = vmatprep.subr.mxu0 0.0
    %1804 = vmatpush1.msra.mxu0 %v489
    %1805 = vmatprep.subr.mxu0 0.0
    %1806 = vmatpush1.msra.mxu0 %v492
    %1807 = vmatprep.subr.mxu0 0.0
    %1808 = vmatpush1.msra.mxu0 %v495
    %1809 = vmatprep.subr.mxu0 0.0
    %1810 = vmatpush1.msra.mxu0 %v498
    %1811 = vmatprep.subr.mxu0 0.0
    %1812 = vmatpush1.msra.mxu0 %v501
    %1813 = vmatprep.subr.mxu0 0.0
    %1814 = vmatpush1.msra.mxu0 %v504
    %1815 = vmatprep.subr.mxu0 0.0
    %1816 = vmatpush1.msra.mxu0 %v507
    %1817 = vmatprep.subr.mxu0 0.0
    %1818 = vmatpush1.msra.mxu0 %v510
    %1819 = vmatprep.subr.mxu0 0.0
    %1820 = vmatpush1.msra.mxu0 0.0
    %1821 = vmatprep.subr.mxu0 0.0
    %1822 = vmatpush1.msra.mxu0 0.0
    %1823 = vmatprep.subr.mxu0 0.0
    %1824 = vmatpush1.msra.mxu0 0.0
    %1825 = vmatprep.subr.mxu0 0.0
    %1826 = vmatpush1.msra.mxu0 0.0
    %1827 = vmatprep.subr.mxu0 0.0
    %1828 = vmatpush1.msra.mxu0 0.0
    %1829 = vmatprep.subr.mxu0 0.0
    %1830 = vmatpush1.msra.mxu0 0.0
    %1831 = vmatprep.subr.mxu0 0.0
    %1832 = vmatpush1.msra.mxu0 0.0
    %1833 = vmatprep.subr.mxu0 0.0
    %1834 = vmatpush1.msra.mxu0 0.0
    %1835 = vmatprep.subr.mxu0 0.0
    %1836 = vmatpush1.msra.mxu0 0.0
    %1837 = vmatprep.subr.mxu0 0.0
    %1838 = vmatpush1.msra.mxu0 0.0
    %1839 = vmatprep.subr.mxu0 0.0
    %1840 = vmatpush1.msra.mxu0 0.0
    %1841 = vmatprep.subr.mxu0 0.0
    %1842 = vmatpush1.msra.mxu0 0.0
    %1843 = vmatprep.subr.mxu0 0.0
    %1844 = vmatpush1.msra.mxu0 0.0
    %1845 = vmatprep.subr.mxu0 0.0
    %1846 = vmatpush1.msra.mxu0 0.0
    %1847 = vmatprep.subr.mxu0 0.0
    %1848 = vmatpush1.msra.mxu0 0.0
    %1849 = vmatprep.subr.mxu0 0.0
    %1850 = vmatpush1.msra.mxu0 0.0
    %1851 = vmatprep.mubr.f32.mxu0 0.0
    %1852 = vmatmul.mubr.f32.gmra.mrb[0].mxu0 %v1711
    %v1853 = vpop.f32.mrb[0].mxu0
    %v1854 = vadd.f32 0.0, %v1853
    %v1855 = vpop.f32.mrb[0].mxu0
    %1856 = vdwg.mxu0
    %v1857 = vadd.f32 %v1715, %v1783
    %v1858 = vxor.u32 %v1857, 2147483648
    %v1859 = vmul.f32 %v1858, 1.442695
    %v1860 = vpow.pop %v1859
    %v1861 = vadd.f32 %v1860, 1.0
    %v1862 = vrcp.pop %v1861
    %v1863 = vmul.f32 1.0, %v1862
    %v1865 = vrot.slane %v1715, 2
    %v1867 = vadd.f32 %v1865, %v1785
    %v1868 = vxor.u32 %v1867, 2147483648
    %v1869 = vmul.f32 %v1868, 1.442695
    %v1870 = vpow.pop %v1869
    %v1871 = vadd.f32 %v1870, 1.0
    %v1872 = vrcp.pop %v1871
    %v1873 = vmul.f32 1.0, %v1872
    %v1874 = vadd.f32 %v1854, %v516
    %v1875 = vmul.f32 %v1863, %v1874
    %v1876 = vrot.slane %v1715, 4
    %v1878 = vadd.f32 %v1876, %v1875
    %v1879 = vtanh.pop %v1878
    %v1880 = vsub.f32 %v1711, %v1879
    %v1881 = vmul.f32 %v1873, %v1880
    %v1882 = vadd.f32 %v1879, %v1881
    %s1883 = scalar_lea.vmem [#allocation3], 14
    %1884 = vst [vmem:[%s1883] sm:$0x3] %v1882
    %1885 = vst [vmem:[#allocation4] sm:$0x3] %v1882
    %v1886 = vld [vmem:[#allocation3] sm:$0x3]
    %v1887 = vld [vmem:[#allocation3 + $0x2] sm:$0x3]
    %v1888 = vld [vmem:[#allocation3 + $0x4] sm:$0x3]
    %v1889 = vld [vmem:[#allocation3 + $0x6] sm:$0x3]
    %v1890 = vld [vmem:[#allocation3 + $0x8] sm:$0x3]
    %v1891 = vld [vmem:[#allocation3 + $0xa] sm:$0x3]
    %v1892 = vld [vmem:[#allocation3 + $0xc] sm:$0x3]
    %v1893 = vld [vmem:[#allocation3 + $0xe] sm:$0x3]
    %v1894 = vcombine.low %v1886, %v1888
    %v1896 = vunpack.c.l.s4 1983009808
    %v1897 = vunpack.c.0.s8 %v1896
    %v1898 = vlaneseq
    %v1899 = vshrl.u32 %v1898, 7
    %v1900 = vsub.s32 %v1897, %v1899
    %v1901 = vrot.slane %v1894, %v1900
    %v1902 = vcombine.low %v1887, %v1889
    %v1904 = vunpack.c.l.s4 1983009808
    %v1905 = vunpack.c.0.s8 %v1904
    %v1906 = vlaneseq
    %v1907 = vshrl.u32 %v1906, 7
    %v1908 = vsub.s32 %v1905, %v1907
    %v1909 = vrot.slane %v1902, %v1908
    %v1910 = vcombine.low %v1890, %v1892
    %v1912 = vunpack.c.l.s4 1983009808
    %v1913 = vunpack.c.0.s8 %v1912
    %v1914 = vlaneseq
    %v1915 = vshrl.u32 %v1914, 7
    %v1916 = vsub.s32 %v1913, %v1915
    %v1917 = vrot.slane %v1910, %v1916
    %v1918 = vcombine.low %v1891, %v1893
    %v1920 = vunpack.c.l.s4 1983009808
    %v1921 = vunpack.c.0.s8 %v1920
    %v1922 = vlaneseq
    %v1923 = vshrl.u32 %v1922, 7
    %v1924 = vsub.s32 %v1921, %v1923
    %v1925 = vrot.slane %v1918, %v1924
    %v1926 = vcombine.low %v1901, %v1909
    %v1928 = vunpack.c.l.s4 1934713408
    %v1929 = vunpack.c.0.s8 %v1928
    %v1930 = vlaneseq
    %v1931 = vshrl.u32 %v1930, 7
    %v1932 = vsub.s32 %v1929, %v1931
    %v1933 = vrot.slane %v1926, %v1932
    %v1934 = vcombine.low %v1917, %v1925
    %v1936 = vunpack.c.l.s4 1934713408
    %v1937 = vunpack.c.0.s8 %v1936
    %v1938 = vlaneseq
    %v1939 = vshrl.u32 %v1938, 7
    %v1940 = vsub.s32 %v1937, %v1939
    %v1941 = vrot.slane %v1934, %v1940
    %v1942 = vcombine.low %v1933, %v1941
    %v1943 = vcombine.high %v1933, %v1941
    %1944 = vst [vmem:[#allocation10] sm:$0xff] %v1942
    %1945 = vst [vmem:[#allocation10 + $0x8] sm:$0xff] %v1943
    // Predicated region
    $region42: #{tpu_custom_call.1} parent=1 // pred_check
      _
    $region43: #{tpu_custom_call.1} parent=1 // pred_check_branch
      %1947 = sbr.rel (0) target = $region45
    $region44: #{tpu_custom_call.1} parent=1 // pred_region
      %s1949 = ssub.s32 256, 256
      %1950 = vsyncadd [#allocation7], %s1949
      %s1951 = sshll.u32 [#allocation10], 4
      %s1952 = int_to_ptr.vmem [resolvable:$true] %s1951
      %1957 = dma.vmem_to_hbm [thread:$0]  %s1952, 256, %s7, [#allocation7], 128, 128, 8
    $region45: #{tpu_custom_call.1} parent=1 // pred_fallthru
      _
    // Predicated region
    $region46: #{tpu_custom_call.1} parent=1 // pred_check
      _
    $region47: #{tpu_custom_call.1} parent=1 // pred_check_branch
      %1959 = sbr.rel (0) target = $region49
    $region48: #{tpu_custom_call.1} parent=1 // pred_region
      %1960 = dma.done [#allocation7], 256
    $region49: #{tpu_custom_call.1} parent=1 // pred_fallthru
      _
    %1961 = vsyncpa [#allocation6], 1
    %1962 = vsyncpa [#allocation9], 1
    %1963 = vsyncpa [#allocation7], 1

</llo_original>
